<compile_context>
chip_gen: v6e
topology: v6e:2x2x1
jax: 0.10.0
libtpu: 0.0.40
codegen_flags: <defaults>
</compile_context>

<pallas_src>
import functools
import math

import jax
import jax.numpy as jnp
from jax.experimental import pallas as pl
from jax.experimental.pallas import tpu as pltpu

IN_FEATS = 32 * 32 * 3   # 3072
HID1 = 10                # true hidden width of conv1
HID1_PAD = 128           # lane-padded hidden width (zero columns are no-ops)
HID2 = 64 * 8            # 512


def encoder_kernel(x_ref, w1_ref, b1_ref, w2_ref, b2_ref, o_ref):
    # First linear: (TILE_B, 3072) @ (3072, 128) -> f32, bias add in f32.
    h = jnp.dot(x_ref[...], w1_ref[...],
                preferred_element_type=jnp.float32) + b1_ref[...]
    # Second linear: (TILE_B, 128) @ (128, 512) -> f32, bias add in f32.
    y = jnp.dot(h.astype(w2_ref.dtype), w2_ref[...],
                preferred_element_type=jnp.float32) + b2_ref[...]
    o_ref[...] = y.astype(o_ref.dtype)


def _round_up(x, m):
    return ((x + m - 1) // m) * m


@functools.partial(jax.jit, static_argnames=("tile_b", "compute_dtype"))
def encoder_forward(x, w1, b1, w2, b2, *, tile_b=256,
                    compute_dtype=jnp.float32):
    """forward(x) = (x @ w1 + b1) @ w2 + b2, tiled over the batch dimension.

    tile_b=256 (f32) keeps VMEM usage ~10 MiB (x tile 3 MiB x 2 buffers +
    0.5 MiB x 2 out + ~1.8 MiB resident weights), safe on v5e/v6e/v7x.
    """
    B = x.shape[0]

    # Cast the large streamed operands; biases stay f32 (f32 bias adds on VPU).
    x_c = x.astype(compute_dtype)
    w1_c = w1.astype(compute_dtype)
    w2_c = w2.astype(compute_dtype)
    b1_f = b1.astype(jnp.float32)
    b2_f = b2.astype(jnp.float32)

    # Lane-pad the 10-wide hidden layer to 128 (zero columns contribute 0).
    w1_p = jnp.pad(w1_c, ((0, 0), (0, HID1_PAD - HID1)))
    b1_p = jnp.pad(b1_f, ((0, 0), (0, HID1_PAD - HID1)))
    w2_p = jnp.pad(w2_c, ((0, HID1_PAD - HID1), (0, 0)))

    # Pick an effective tile and pad the batch to a multiple of it.
    tile_b_eff = min(tile_b, _round_up(B, 8))
    b_pad = _round_up(B, tile_b_eff)
    if b_pad != B:
        x_c = jnp.pad(x_c, ((0, b_pad - B), (0, 0)))
    grid = (b_pad // tile_b_eff,)

    in_bytes = jnp.dtype(compute_dtype).itemsize
    cost = pl.CostEstimate(
        flops=2 * b_pad * (IN_FEATS * HID1_PAD + HID1_PAD * HID2),
        transcendentals=0,
        bytes_accessed=(b_pad * IN_FEATS * in_bytes            # x streamed in
                        + b_pad * HID2 * 4                      # f32 output
                        + (IN_FEATS * HID1_PAD + HID1_PAD * HID2) * in_bytes
                        + (HID1_PAD + HID2) * 4),               # weights/biases
    )

    out = pl.pallas_call(
        encoder_kernel,
        out_shape=jax.ShapeDtypeStruct((b_pad, HID2), jnp.float32),
        grid_spec=pltpu.PrefetchScalarGridSpec(
            num_scalar_prefetch=0,
            grid=grid,
            in_specs=[
                # x streams tile-by-tile over the batch.
                pl.BlockSpec((tile_b_eff, IN_FEATS), lambda i: (i, 0)),
                # Weights / biases: constant block -> DMA'd once, VMEM-resident.
                pl.BlockSpec((IN_FEATS, HID1_PAD), lambda i: (0, 0)),
                pl.BlockSpec((1, HID1_PAD), lambda i: (0, 0)),
                pl.BlockSpec((HID1_PAD, HID2), lambda i: (0, 0)),
                pl.BlockSpec((1, HID2), lambda i: (0, 0)),
            ],
            out_specs=pl.BlockSpec((tile_b_eff, HID2), lambda i: (i, 0)),
        ),
        compiler_params=pltpu.CompilerParams(
            dimension_semantics=("parallel",),      # megacore sharding on v7x
            vmem_limit_bytes=32 * 1024 * 1024,      # safe on 16/32 MiB defaults
        ),
        cost_estimate=cost,
    )(x_c, w1_p, b1_p, w2_p, b2_f)

    return out[:B]


def init_params(key):
    """Deterministic init mimicking PyTorch nn.Linear default U[-1/sqrt(fan_in), +]."""
    k1, k2, k3, k4, k5, k6 = jax.random.split(key, 6)
    bound1 = 1.0 / math.sqrt(IN_FEATS)
    bound2 = 1.0 / math.sqrt(HID1)
    bound3 = 1.0 / math.sqrt(HID2)
    # Stored as (in, out) so the kernel computes x @ W.
    w1 = jax.random.uniform(k1, (IN_FEATS, HID1), jnp.float32, -bound1, bound1)
    b1 = jax.random.uniform(k2, (1, HID1), jnp.float32, -bound1, bound1)
    w2 = jax.random.uniform(k3, (HID1, HID2), jnp.float32, -bound2, bound2)
    b2 = jax.random.uniform(k4, (1, HID2), jnp.float32, -bound2, bound2)
    # `out` layer parameters (unused in forward, kept for parity with the module).
    w_out = jax.random.uniform(k5, (HID2, HID1), jnp.float32, -bound3, bound3)
    b_out = jax.random.uniform(k6, (1, HID1), jnp.float32, -bound3, bound3)
    return (w1, b1, w2, b2, w_out, b_out)


if __name__ == "__main__":
    key = jax.random.PRNGKey(0)
    kx, kp = jax.random.split(key)

    B = 8  # small example batch
    x = jax.random.normal(kx, (B, IN_FEATS), jnp.float32)
    w1, b1, w2, b2, _w_out, _b_out = init_params(kp)

    # Reference (same math as the PyTorch forward).
    y_ref = (x @ w1 + b1) @ w2 + b2

    # f32 path: numerically matches the reference.
    y = encoder_forward(x, w1, b1, w2, b2, tile_b=256,
                        compute_dtype=jnp.float32)
    y = jax.block_until_ready(y)
    assert y.shape == (B, HID2)
    assert jnp.allclose(y, y_ref, atol=1e-4, rtol=1e-4)

    # bf16 streaming path: halves HBM bytes for x / weights, f32 accumulation.
    y_bf = encoder_forward(x, w1, b1, w2, b2, tile_b=256,
                           compute_dtype=jnp.bfloat16)
    y_bf = jax.block_until_ready(y_bf)
    assert y_bf.shape == (B, HID2)
    assert jnp.allclose(y_bf, y_ref, atol=5e-2, rtol=5e-2)

    print("KERNEL_OK")
</pallas_src>

<mosaic_0001>
module attributes {stable_mosaic.version = 11 : i64} {
  func.func @encoder_kernel(%arg0: i32, %arg1: memref<8x3072xf32, #tpu.memory_space<vmem>>, %arg2: memref<3072x128xf32, #tpu.memory_space<vmem>>, %arg3: memref<1x128xf32, #tpu.memory_space<vmem>>, %arg4: memref<128x512xf32, #tpu.memory_space<vmem>>, %arg5: memref<1x512xf32, #tpu.memory_space<vmem>>, %arg6: memref<8x512xf32, #tpu.memory_space<vmem>>) attributes {dimension_semantics = [#tpu.dimension_semantics<parallel>], iteration_bounds = array<i64: 1>, scalar_prefetch = 0 : i64, scratch_operands = 0 : i64, tpu.core_type = #tpu.core_type<tc>, window_params = [{transform_indices = @transform_0, window_bounds = array<i64: 8, 3072>}, {pipeline_mode = #tpu.pipeline_mode<synchronous>, transform_indices = @transform_1, window_bounds = array<i64: 3072, 128>}, {pipeline_mode = #tpu.pipeline_mode<synchronous>, transform_indices = @transform_2, window_bounds = array<i64: 1, 128>}, {pipeline_mode = #tpu.pipeline_mode<synchronous>, transform_indices = @transform_3, window_bounds = array<i64: 128, 512>}, {pipeline_mode = #tpu.pipeline_mode<synchronous>, transform_indices = @transform_4, window_bounds = array<i64: 1, 512>}, {transform_indices = @transform_5, window_bounds = array<i64: 8, 512>}]} {
    %c0 = arith.constant 0 : index
    %c0_0 = arith.constant 0 : index
    %0 = vector.load %arg1[%c0, %c0_0] : memref<8x3072xf32, #tpu.memory_space<vmem>>, vector<8x3072xf32>
    %c0_1 = arith.constant 0 : index
    %c0_2 = arith.constant 0 : index
    %1 = vector.load %arg2[%c0_1, %c0_2] : memref<3072x128xf32, #tpu.memory_space<vmem>>, vector<3072x128xf32>
    %cst = arith.constant dense<0.000000e+00> : vector<8x128xf32>
    %2 = tpu.matmul %0, %1, %cst {dimension_numbers = #tpu.dot_dimension_numbers<[1], [0], [0], [1], [0, 0, 1, 1], [], []>} : vector<8x3072xf32>, vector<3072x128xf32>, vector<8x128xf32> -> vector<8x128xf32>
    %c0_3 = arith.constant 0 : index
    %c0_4 = arith.constant 0 : index
    %3 = vector.load %arg3[%c0_3, %c0_4] : memref<1x128xf32, #tpu.memory_space<vmem>>, vector<1x128xf32>
    %4 = vector.broadcast %3 : vector<1x128xf32> to vector<8x128xf32>
    %5 = arith.addf %2, %4 : vector<8x128xf32>
    %c0_5 = arith.constant 0 : index
    %c0_6 = arith.constant 0 : index
    %6 = vector.load %arg4[%c0_5, %c0_6] : memref<128x512xf32, #tpu.memory_space<vmem>>, vector<128x512xf32>
    %cst_7 = arith.constant dense<0.000000e+00> : vector<8x512xf32>
    %7 = tpu.matmul %5, %6, %cst_7 {dimension_numbers = #tpu.dot_dimension_numbers<[1], [0], [0], [1], [0, 0, 1, 1], [], []>} : vector<8x128xf32>, vector<128x512xf32>, vector<8x512xf32> -> vector<8x512xf32>
    %c0_8 = arith.constant 0 : index
    %c0_9 = arith.constant 0 : index
    %8 = vector.load %arg5[%c0_8, %c0_9] : memref<1x512xf32, #tpu.memory_space<vmem>>, vector<1x512xf32>
    %9 = vector.broadcast %8 : vector<1x512xf32> to vector<8x512xf32>
    %10 = arith.addf %7, %9 : vector<8x512xf32>
    %c0_10 = arith.constant 0 : index
    %c0_11 = arith.constant 0 : index
    %11 = vector.load %arg6[%c0_10, %c0_11] : memref<8x512xf32, #tpu.memory_space<vmem>>, vector<8x512xf32>
    tpu.vector_store %arg6[%c0_10, %c0_11], %10 {strides = array<i32>} : memref<8x512xf32, #tpu.memory_space<vmem>>, vector<8x512xf32>,
    return
  }
  func.func @transform_0(%arg0: i32) -> (i32, i32) {
    %c0_i32 = arith.constant 0 : i32
    %c0_i32_0 = arith.constant 0 : i32
    return %arg0, %c0_i32 : i32, i32
  }
  func.func @transform_1(%arg0: i32) -> (i32, i32) {
    %c0_i32 = arith.constant 0 : i32
    %c0_i32_0 = arith.constant 0 : i32
    %c0_i32_1 = arith.constant 0 : i32
    return %c0_i32, %c0_i32_0 : i32, i32
  }
  func.func @transform_2(%arg0: i32) -> (i32, i32) {
    %c0_i32 = arith.constant 0 : i32
    %c0_i32_0 = arith.constant 0 : i32
    %c0_i32_1 = arith.constant 0 : i32
    return %c0_i32, %c0_i32_0 : i32, i32
  }
  func.func @transform_3(%arg0: i32) -> (i32, i32) {
    %c0_i32 = arith.constant 0 : i32
    %c0_i32_0 = arith.constant 0 : i32
    %c0_i32_1 = arith.constant 0 : i32
    return %c0_i32, %c0_i32_0 : i32, i32
  }
  func.func @transform_4(%arg0: i32) -> (i32, i32) {
    %c0_i32 = arith.constant 0 : i32
    %c0_i32_0 = arith.constant 0 : i32
    %c0_i32_1 = arith.constant 0 : i32
    return %c0_i32, %c0_i32_0 : i32, i32
  }
  func.func @transform_5(%arg0: i32) -> (i32, i32) {
    %c0_i32 = arith.constant 0 : i32
    %c0_i32_0 = arith.constant 0 : i32
    return %arg0, %c0_i32 : i32, i32
  }
}

</mosaic_0001>

<llo_original>
// kernel: encoder_forward.1
$region0: #{encoder_forward.1}
  #allocation0 [shape = 'u32[]', space=smem, size = 0x4, offset = 0x4, fixed_abs, tag = 'smem constant byte address 0x4 - core index']
  #allocation1 [shape = 'u32[144,128]{1,0:T(1,128)}', space=vmem, size = 0x12000, scoped, tag = 'internal scratch']
  %s0 = inlined_call_operand.vmem [shape: f32[8,3072], index: 0, kind: input, shape index: {}]
  %s1 = inlined_call_operand.vmem [shape: f32[3072,128], index: 1, kind: input, shape index: {}]
  %s2 = inlined_call_operand.vmem [shape: f32[1,128], index: 2, kind: input, shape index: {}]
  %s3 = inlined_call_operand.vmem [shape: f32[128,512], index: 3, kind: input, shape index: {}]
  %s4 = inlined_call_operand.vmem [shape: f32[1,512], index: 4, kind: input, shape index: {}]
  %s5 = inlined_call_operand.hbm [shape: f32[8,512], index: 5, kind: output, shape index: {}]
  %s6 = sld [smem:[#allocation0]]
  $region30: #{encoder_forward.1} parent=0
    _
  %s8 = ssub.s32 1, %s6
  %s9 = scalar_select 0, %s8, %s6
  $region1: #{encoder_forward.1} parent=0
    #allocation2 [shape = 'u8[16384]{0}', space=vmem, size = 0x4000, scoped, tag = 'output window, operand 0, single buffered']
    #allocation3 [shape = 's32[1]{0}', space=sflag, size = 0x4, scoped, tag = 'scoped memory for encoder_forward.1']
    %10 = vsyncpa [#allocation3], 0
    // Predicated region
    $region2: #{encoder_forward.1} parent=1 // pred_check
      _
    $region3: #{encoder_forward.1} parent=1 // pred_check_branch
      %12 = sbr.rel (0) target = $region5
    $region4: #{encoder_forward.1} parent=1 // pred_region
      _
    $region5: #{encoder_forward.1} parent=1 // pred_fallthru
      _
    // Predicated region
    $region6: #{encoder_forward.1} parent=1 // pred_check
      _
    $region7: #{encoder_forward.1} parent=1 // pred_check_branch
      %14 = sbr.rel (0) target = $region9
    $region8: #{encoder_forward.1} parent=1 // pred_region
      _
    $region9: #{encoder_forward.1} parent=1 // pred_fallthru
      _
    // Predicated region
    $region10: #{encoder_forward.1} parent=1 // pred_check
      _
    $region11: #{encoder_forward.1} parent=1 // pred_check_branch
      %16 = sbr.rel (0) target = $region13
    $region12: #{encoder_forward.1} parent=1 // pred_region
      _
    $region13: #{encoder_forward.1} parent=1 // pred_fallthru
      _
    // Predicated region
    $region14: #{encoder_forward.1} parent=1 // pred_check
      _
    $region15: #{encoder_forward.1} parent=1 // pred_check_branch
      %18 = sbr.rel (0) target = $region17
    $region16: #{encoder_forward.1} parent=1 // pred_region
      _
    $region17: #{encoder_forward.1} parent=1 // pred_fallthru
      _
    // Predicated region
    $region18: #{encoder_forward.1} parent=1 // pred_check
      _
    $region19: #{encoder_forward.1} parent=1 // pred_check_branch
      %20 = sbr.rel (0) target = $region21
    $region20: #{encoder_forward.1} parent=1 // pred_region
      _
    $region21: #{encoder_forward.1} parent=1 // pred_fallthru
      _
    %v21 = vld [vmem:[%s0] sm:$0xff]
    %v22 = vld [vmem:[%s0 + $0x8] sm:$0xff]
    %v23 = vld [vmem:[%s0 + $0x10] sm:$0xff]
    %v24 = vld [vmem:[%s0 + $0x18] sm:$0xff]
    %v25 = vld [vmem:[%s0 + $0x20] sm:$0xff]
    %v26 = vld [vmem:[%s0 + $0x28] sm:$0xff]
    %v27 = vld [vmem:[%s0 + $0x30] sm:$0xff]
    %v28 = vld [vmem:[%s0 + $0x38] sm:$0xff]
    %v29 = vld [vmem:[%s0 + $0x40] sm:$0xff]
    %v30 = vld [vmem:[%s0 + $0x48] sm:$0xff]
    %v31 = vld [vmem:[%s0 + $0x50] sm:$0xff]
    %v32 = vld [vmem:[%s0 + $0x58] sm:$0xff]
    %v33 = vld [vmem:[%s0 + $0x60] sm:$0xff]
    %v34 = vld [vmem:[%s0 + $0x68] sm:$0xff]
    %v35 = vld [vmem:[%s0 + $0x70] sm:$0xff]
    %v36 = vld [vmem:[%s0 + $0x78] sm:$0xff]
    %v37 = vld [vmem:[%s0 + $0x80] sm:$0xff]
    %v38 = vld [vmem:[%s0 + $0x88] sm:$0xff]
    %v39 = vld [vmem:[%s0 + $0x90] sm:$0xff]
    %v40 = vld [vmem:[%s0 + $0x98] sm:$0xff]
    %v41 = vld [vmem:[%s0 + $0xa0] sm:$0xff]
    %v42 = vld [vmem:[%s0 + $0xa8] sm:$0xff]
    %v43 = vld [vmem:[%s0 + $0xb0] sm:$0xff]
    %v44 = vld [vmem:[%s0 + $0xb8] sm:$0xff]
    %v45 = vld [vmem:[%s1] sm:$0xff]
    %v46 = vld [vmem:[%s1 + $0x8] sm:$0xff]
    %v47 = vld [vmem:[%s1 + $0x10] sm:$0xff]
    %v48 = vld [vmem:[%s1 + $0x18] sm:$0xff]
    %v49 = vld [vmem:[%s1 + $0x20] sm:$0xff]
    %v50 = vld [vmem:[%s1 + $0x28] sm:$0xff]
    %v51 = vld [vmem:[%s1 + $0x30] sm:$0xff]
    %v52 = vld [vmem:[%s1 + $0x38] sm:$0xff]
    %v53 = vld [vmem:[%s1 + $0x40] sm:$0xff]
    %v54 = vld [vmem:[%s1 + $0x48] sm:$0xff]
    %v55 = vld [vmem:[%s1 + $0x50] sm:$0xff]
    %v56 = vld [vmem:[%s1 + $0x58] sm:$0xff]
    %v57 = vld [vmem:[%s1 + $0x60] sm:$0xff]
    %v58 = vld [vmem:[%s1 + $0x68] sm:$0xff]
    %v59 = vld [vmem:[%s1 + $0x70] sm:$0xff]
    %v60 = vld [vmem:[%s1 + $0x78] sm:$0xff]
    %v61 = vld [vmem:[%s1 + $0x80] sm:$0xff]
    %v62 = vld [vmem:[%s1 + $0x88] sm:$0xff]
    %v63 = vld [vmem:[%s1 + $0x90] sm:$0xff]
    %v64 = vld [vmem:[%s1 + $0x98] sm:$0xff]
    %v65 = vld [vmem:[%s1 + $0xa0] sm:$0xff]
    %v66 = vld [vmem:[%s1 + $0xa8] sm:$0xff]
    %v67 = vld [vmem:[%s1 + $0xb0] sm:$0xff]
    %v68 = vld [vmem:[%s1 + $0xb8] sm:$0xff]
    %v69 = vld [vmem:[%s1 + $0xc0] sm:$0xff]
    %v70 = vld [vmem:[%s1 + $0xc8] sm:$0xff]
    %v71 = vld [vmem:[%s1 + $0xd0] sm:$0xff]
    %v72 = vld [vmem:[%s1 + $0xd8] sm:$0xff]
    %v73 = vld [vmem:[%s1 + $0xe0] sm:$0xff]
    %v74 = vld [vmem:[%s1 + $0xe8] sm:$0xff]
    %v75 = vld [vmem:[%s1 + $0xf0] sm:$0xff]
    %v76 = vld [vmem:[%s1 + $0xf8] sm:$0xff]
    %v77 = vld [vmem:[%s1 + $0x100] sm:$0xff]
    %v78 = vld [vmem:[%s1 + $0x108] sm:$0xff]
    %v79 = vld [vmem:[%s1 + $0x110] sm:$0xff]
    %v80 = vld [vmem:[%s1 + $0x118] sm:$0xff]
    %v81 = vld [vmem:[%s1 + $0x120] sm:$0xff]
    %v82 = vld [vmem:[%s1 + $0x128] sm:$0xff]
    %v83 = vld [vmem:[%s1 + $0x130] sm:$0xff]
    %v84 = vld [vmem:[%s1 + $0x138] sm:$0xff]
    %v85 = vld [vmem:[%s1 + $0x140] sm:$0xff]
    %v86 = vld [vmem:[%s1 + $0x148] sm:$0xff]
    %v87 = vld [vmem:[%s1 + $0x150] sm:$0xff]
    %v88 = vld [vmem:[%s1 + $0x158] sm:$0xff]
    %v89 = vld [vmem:[%s1 + $0x160] sm:$0xff]
    %v90 = vld [vmem:[%s1 + $0x168] sm:$0xff]
    %v91 = vld [vmem:[%s1 + $0x170] sm:$0xff]
    %v92 = vld [vmem:[%s1 + $0x178] sm:$0xff]
    %v93 = vld [vmem:[%s1 + $0x180] sm:$0xff]
    %v94 = vld [vmem:[%s1 + $0x188] sm:$0xff]
    %v95 = vld [vmem:[%s1 + $0x190] sm:$0xff]
    %v96 = vld [vmem:[%s1 + $0x198] sm:$0xff]
    %v97 = vld [vmem:[%s1 + $0x1a0] sm:$0xff]
    %v98 = vld [vmem:[%s1 + $0x1a8] sm:$0xff]
    %v99 = vld [vmem:[%s1 + $0x1b0] sm:$0xff]
    %v100 = vld [vmem:[%s1 + $0x1b8] sm:$0xff]
    %v101 = vld [vmem:[%s1 + $0x1c0] sm:$0xff]
    %v102 = vld [vmem:[%s1 + $0x1c8] sm:$0xff]
    %v103 = vld [vmem:[%s1 + $0x1d0] sm:$0xff]
    %v104 = vld [vmem:[%s1 + $0x1d8] sm:$0xff]
    %v105 = vld [vmem:[%s1 + $0x1e0] sm:$0xff]
    %v106 = vld [vmem:[%s1 + $0x1e8] sm:$0xff]
    %v107 = vld [vmem:[%s1 + $0x1f0] sm:$0xff]
    %v108 = vld [vmem:[%s1 + $0x1f8] sm:$0xff]
    %v109 = vld [vmem:[%s1 + $0x200] sm:$0xff]
    %v110 = vld [vmem:[%s1 + $0x208] sm:$0xff]
    %v111 = vld [vmem:[%s1 + $0x210] sm:$0xff]
    %v112 = vld [vmem:[%s1 + $0x218] sm:$0xff]
    %v113 = vld [vmem:[%s1 + $0x220] sm:$0xff]
    %v114 = vld [vmem:[%s1 + $0x228] sm:$0xff]
    %v115 = vld [vmem:[%s1 + $0x230] sm:$0xff]
    %v116 = vld [vmem:[%s1 + $0x238] sm:$0xff]
    %v117 = vld [vmem:[%s1 + $0x240] sm:$0xff]
    %v118 = vld [vmem:[%s1 + $0x248] sm:$0xff]
    %v119 = vld [vmem:[%s1 + $0x250] sm:$0xff]
    %v120 = vld [vmem:[%s1 + $0x258] sm:$0xff]
    %v121 = vld [vmem:[%s1 + $0x260] sm:$0xff]
    %v122 = vld [vmem:[%s1 + $0x268] sm:$0xff]
    %v123 = vld [vmem:[%s1 + $0x270] sm:$0xff]
    %v124 = vld [vmem:[%s1 + $0x278] sm:$0xff]
    %v125 = vld [vmem:[%s1 + $0x280] sm:$0xff]
    %v126 = vld [vmem:[%s1 + $0x288] sm:$0xff]
    %v127 = vld [vmem:[%s1 + $0x290] sm:$0xff]
    %v128 = vld [vmem:[%s1 + $0x298] sm:$0xff]
    %v129 = vld [vmem:[%s1 + $0x2a0] sm:$0xff]
    %v130 = vld [vmem:[%s1 + $0x2a8] sm:$0xff]
    %v131 = vld [vmem:[%s1 + $0x2b0] sm:$0xff]
    %v132 = vld [vmem:[%s1 + $0x2b8] sm:$0xff]
    %v133 = vld [vmem:[%s1 + $0x2c0] sm:$0xff]
    %v134 = vld [vmem:[%s1 + $0x2c8] sm:$0xff]
    %v135 = vld [vmem:[%s1 + $0x2d0] sm:$0xff]
    %v136 = vld [vmem:[%s1 + $0x2d8] sm:$0xff]
    %v137 = vld [vmem:[%s1 + $0x2e0] sm:$0xff]
    %v138 = vld [vmem:[%s1 + $0x2e8] sm:$0xff]
    %v139 = vld [vmem:[%s1 + $0x2f0] sm:$0xff]
    %v140 = vld [vmem:[%s1 + $0x2f8] sm:$0xff]
    %v141 = vld [vmem:[%s1 + $0x300] sm:$0xff]
    %v142 = vld [vmem:[%s1 + $0x308] sm:$0xff]
    %v143 = vld [vmem:[%s1 + $0x310] sm:$0xff]
    %v144 = vld [vmem:[%s1 + $0x318] sm:$0xff]
    %v145 = vld [vmem:[%s1 + $0x320] sm:$0xff]
    %v146 = vld [vmem:[%s1 + $0x328] sm:$0xff]
    %v147 = vld [vmem:[%s1 + $0x330] sm:$0xff]
    %v148 = vld [vmem:[%s1 + $0x338] sm:$0xff]
    %v149 = vld [vmem:[%s1 + $0x340] sm:$0xff]
    %v150 = vld [vmem:[%s1 + $0x348] sm:$0xff]
    %v151 = vld [vmem:[%s1 + $0x350] sm:$0xff]
    %v152 = vld [vmem:[%s1 + $0x358] sm:$0xff]
    %v153 = vld [vmem:[%s1 + $0x360] sm:$0xff]
    %v154 = vld [vmem:[%s1 + $0x368] sm:$0xff]
    %v155 = vld [vmem:[%s1 + $0x370] sm:$0xff]
    %v156 = vld [vmem:[%s1 + $0x378] sm:$0xff]
    %v157 = vld [vmem:[%s1 + $0x380] sm:$0xff]
    %v158 = vld [vmem:[%s1 + $0x388] sm:$0xff]
    %v159 = vld [vmem:[%s1 + $0x390] sm:$0xff]
    %v160 = vld [vmem:[%s1 + $0x398] sm:$0xff]
    %v161 = vld [vmem:[%s1 + $0x3a0] sm:$0xff]
    %v162 = vld [vmem:[%s1 + $0x3a8] sm:$0xff]
    %v163 = vld [vmem:[%s1 + $0x3b0] sm:$0xff]
    %v164 = vld [vmem:[%s1 + $0x3b8] sm:$0xff]
    %v165 = vld [vmem:[%s1 + $0x3c0] sm:$0xff]
    %v166 = vld [vmem:[%s1 + $0x3c8] sm:$0xff]
    %v167 = vld [vmem:[%s1 + $0x3d0] sm:$0xff]
    %v168 = vld [vmem:[%s1 + $0x3d8] sm:$0xff]
    %v169 = vld [vmem:[%s1 + $0x3e0] sm:$0xff]
    %v170 = vld [vmem:[%s1 + $0x3e8] sm:$0xff]
    %v171 = vld [vmem:[%s1 + $0x3f0] sm:$0xff]
    %v172 = vld [vmem:[%s1 + $0x3f8] sm:$0xff]
    %v173 = vld [vmem:[%s1 + $0x400] sm:$0xff]
    %v174 = vld [vmem:[%s1 + $0x408] sm:$0xff]
    %v175 = vld [vmem:[%s1 + $0x410] sm:$0xff]
    %v176 = vld [vmem:[%s1 + $0x418] sm:$0xff]
    %v177 = vld [vmem:[%s1 + $0x420] sm:$0xff]
    %v178 = vld [vmem:[%s1 + $0x428] sm:$0xff]
    %v179 = vld [vmem:[%s1 + $0x430] sm:$0xff]
    %v180 = vld [vmem:[%s1 + $0x438] sm:$0xff]
    %v181 = vld [vmem:[%s1 + $0x440] sm:$0xff]
    %v182 = vld [vmem:[%s1 + $0x448] sm:$0xff]
    %v183 = vld [vmem:[%s1 + $0x450] sm:$0xff]
    %v184 = vld [vmem:[%s1 + $0x458] sm:$0xff]
    %v185 = vld [vmem:[%s1 + $0x460] sm:$0xff]
    %v186 = vld [vmem:[%s1 + $0x468] sm:$0xff]
    %v187 = vld [vmem:[%s1 + $0x470] sm:$0xff]
    %v188 = vld [vmem:[%s1 + $0x478] sm:$0xff]
    %v189 = vld [vmem:[%s1 + $0x480] sm:$0xff]
    %v190 = vld [vmem:[%s1 + $0x488] sm:$0xff]
    %v191 = vld [vmem:[%s1 + $0x490] sm:$0xff]
    %v192 = vld [vmem:[%s1 + $0x498] sm:$0xff]
    %v193 = vld [vmem:[%s1 + $0x4a0] sm:$0xff]
    %v194 = vld [vmem:[%s1 + $0x4a8] sm:$0xff]
    %v195 = vld [vmem:[%s1 + $0x4b0] sm:$0xff]
    %v196 = vld [vmem:[%s1 + $0x4b8] sm:$0xff]
    %v197 = vld [vmem:[%s1 + $0x4c0] sm:$0xff]
    %v198 = vld [vmem:[%s1 + $0x4c8] sm:$0xff]
    %v199 = vld [vmem:[%s1 + $0x4d0] sm:$0xff]
    %v200 = vld [vmem:[%s1 + $0x4d8] sm:$0xff]
    %v201 = vld [vmem:[%s1 + $0x4e0] sm:$0xff]
    %v202 = vld [vmem:[%s1 + $0x4e8] sm:$0xff]
    %v203 = vld [vmem:[%s1 + $0x4f0] sm:$0xff]
    %v204 = vld [vmem:[%s1 + $0x4f8] sm:$0xff]
    %v205 = vld [vmem:[%s1 + $0x500] sm:$0xff]
    %v206 = vld [vmem:[%s1 + $0x508] sm:$0xff]
    %v207 = vld [vmem:[%s1 + $0x510] sm:$0xff]
    %v208 = vld [vmem:[%s1 + $0x518] sm:$0xff]
    %v209 = vld [vmem:[%s1 + $0x520] sm:$0xff]
    %v210 = vld [vmem:[%s1 + $0x528] sm:$0xff]
    %v211 = vld [vmem:[%s1 + $0x530] sm:$0xff]
    %v212 = vld [vmem:[%s1 + $0x538] sm:$0xff]
    %v213 = vld [vmem:[%s1 + $0x540] sm:$0xff]
    %v214 = vld [vmem:[%s1 + $0x548] sm:$0xff]
    %v215 = vld [vmem:[%s1 + $0x550] sm:$0xff]
    %v216 = vld [vmem:[%s1 + $0x558] sm:$0xff]
    %v217 = vld [vmem:[%s1 + $0x560] sm:$0xff]
    %v218 = vld [vmem:[%s1 + $0x568] sm:$0xff]
    %v219 = vld [vmem:[%s1 + $0x570] sm:$0xff]
    %v220 = vld [vmem:[%s1 + $0x578] sm:$0xff]
    %v221 = vld [vmem:[%s1 + $0x580] sm:$0xff]
    %v222 = vld [vmem:[%s1 + $0x588] sm:$0xff]
    %v223 = vld [vmem:[%s1 + $0x590] sm:$0xff]
    %v224 = vld [vmem:[%s1 + $0x598] sm:$0xff]
    %v225 = vld [vmem:[%s1 + $0x5a0] sm:$0xff]
    %v226 = vld [vmem:[%s1 + $0x5a8] sm:$0xff]
    %v227 = vld [vmem:[%s1 + $0x5b0] sm:$0xff]
    %v228 = vld [vmem:[%s1 + $0x5b8] sm:$0xff]
    %v229 = vld [vmem:[%s1 + $0x5c0] sm:$0xff]
    %v230 = vld [vmem:[%s1 + $0x5c8] sm:$0xff]
    %v231 = vld [vmem:[%s1 + $0x5d0] sm:$0xff]
    %v232 = vld [vmem:[%s1 + $0x5d8] sm:$0xff]
    %v233 = vld [vmem:[%s1 + $0x5e0] sm:$0xff]
    %v234 = vld [vmem:[%s1 + $0x5e8] sm:$0xff]
    %v235 = vld [vmem:[%s1 + $0x5f0] sm:$0xff]
    %v236 = vld [vmem:[%s1 + $0x5f8] sm:$0xff]
    %v237 = vld [vmem:[%s1 + $0x600] sm:$0xff]
    %v238 = vld [vmem:[%s1 + $0x608] sm:$0xff]
    %v239 = vld [vmem:[%s1 + $0x610] sm:$0xff]
    %v240 = vld [vmem:[%s1 + $0x618] sm:$0xff]
    %v241 = vld [vmem:[%s1 + $0x620] sm:$0xff]
    %v242 = vld [vmem:[%s1 + $0x628] sm:$0xff]
    %v243 = vld [vmem:[%s1 + $0x630] sm:$0xff]
    %v244 = vld [vmem:[%s1 + $0x638] sm:$0xff]
    %v245 = vld [vmem:[%s1 + $0x640] sm:$0xff]
    %v246 = vld [vmem:[%s1 + $0x648] sm:$0xff]
    %v247 = vld [vmem:[%s1 + $0x650] sm:$0xff]
    %v248 = vld [vmem:[%s1 + $0x658] sm:$0xff]
    %v249 = vld [vmem:[%s1 + $0x660] sm:$0xff]
    %v250 = vld [vmem:[%s1 + $0x668] sm:$0xff]
    %v251 = vld [vmem:[%s1 + $0x670] sm:$0xff]
    %v252 = vld [vmem:[%s1 + $0x678] sm:$0xff]
    %v253 = vld [vmem:[%s1 + $0x680] sm:$0xff]
    %v254 = vld [vmem:[%s1 + $0x688] sm:$0xff]
    %v255 = vld [vmem:[%s1 + $0x690] sm:$0xff]
    %v256 = vld [vmem:[%s1 + $0x698] sm:$0xff]
    %v257 = vld [vmem:[%s1 + $0x6a0] sm:$0xff]
    %v258 = vld [vmem:[%s1 + $0x6a8] sm:$0xff]
    %v259 = vld [vmem:[%s1 + $0x6b0] sm:$0xff]
    %v260 = vld [vmem:[%s1 + $0x6b8] sm:$0xff]
    %v261 = vld [vmem:[%s1 + $0x6c0] sm:$0xff]
    %v262 = vld [vmem:[%s1 + $0x6c8] sm:$0xff]
    %v263 = vld [vmem:[%s1 + $0x6d0] sm:$0xff]
    %v264 = vld [vmem:[%s1 + $0x6d8] sm:$0xff]
    %v265 = vld [vmem:[%s1 + $0x6e0] sm:$0xff]
    %v266 = vld [vmem:[%s1 + $0x6e8] sm:$0xff]
    %v267 = vld [vmem:[%s1 + $0x6f0] sm:$0xff]
    %v268 = vld [vmem:[%s1 + $0x6f8] sm:$0xff]
    %v269 = vld [vmem:[%s1 + $0x700] sm:$0xff]
    %v270 = vld [vmem:[%s1 + $0x708] sm:$0xff]
    %v271 = vld [vmem:[%s1 + $0x710] sm:$0xff]
    %v272 = vld [vmem:[%s1 + $0x718] sm:$0xff]
    %v273 = vld [vmem:[%s1 + $0x720] sm:$0xff]
    %v274 = vld [vmem:[%s1 + $0x728] sm:$0xff]
    %v275 = vld [vmem:[%s1 + $0x730] sm:$0xff]
    %v276 = vld [vmem:[%s1 + $0x738] sm:$0xff]
    %v277 = vld [vmem:[%s1 + $0x740] sm:$0xff]
    %v278 = vld [vmem:[%s1 + $0x748] sm:$0xff]
    %v279 = vld [vmem:[%s1 + $0x750] sm:$0xff]
    %v280 = vld [vmem:[%s1 + $0x758] sm:$0xff]
    %v281 = vld [vmem:[%s1 + $0x760] sm:$0xff]
    %v282 = vld [vmem:[%s1 + $0x768] sm:$0xff]
    %v283 = vld [vmem:[%s1 + $0x770] sm:$0xff]
    %v284 = vld [vmem:[%s1 + $0x778] sm:$0xff]
    %v285 = vld [vmem:[%s1 + $0x780] sm:$0xff]
    %v286 = vld [vmem:[%s1 + $0x788] sm:$0xff]
    %v287 = vld [vmem:[%s1 + $0x790] sm:$0xff]
    %v288 = vld [vmem:[%s1 + $0x798] sm:$0xff]
    %v289 = vld [vmem:[%s1 + $0x7a0] sm:$0xff]
    %v290 = vld [vmem:[%s1 + $0x7a8] sm:$0xff]
    %v291 = vld [vmem:[%s1 + $0x7b0] sm:$0xff]
    %v292 = vld [vmem:[%s1 + $0x7b8] sm:$0xff]
    %v293 = vld [vmem:[%s1 + $0x7c0] sm:$0xff]
    %v294 = vld [vmem:[%s1 + $0x7c8] sm:$0xff]
    %v295 = vld [vmem:[%s1 + $0x7d0] sm:$0xff]
    %v296 = vld [vmem:[%s1 + $0x7d8] sm:$0xff]
    %v297 = vld [vmem:[%s1 + $0x7e0] sm:$0xff]
    %v298 = vld [vmem:[%s1 + $0x7e8] sm:$0xff]
    %v299 = vld [vmem:[%s1 + $0x7f0] sm:$0xff]
    %v300 = vld [vmem:[%s1 + $0x7f8] sm:$0xff]
    %v301 = vld [vmem:[%s1 + $0x800] sm:$0xff]
    %v302 = vld [vmem:[%s1 + $0x808] sm:$0xff]
    %v303 = vld [vmem:[%s1 + $0x810] sm:$0xff]
    %v304 = vld [vmem:[%s1 + $0x818] sm:$0xff]
    %v305 = vld [vmem:[%s1 + $0x820] sm:$0xff]
    %v306 = vld [vmem:[%s1 + $0x828] sm:$0xff]
    %v307 = vld [vmem:[%s1 + $0x830] sm:$0xff]
    %v308 = vld [vmem:[%s1 + $0x838] sm:$0xff]
    %v309 = vld [vmem:[%s1 + $0x840] sm:$0xff]
    %v310 = vld [vmem:[%s1 + $0x848] sm:$0xff]
    %v311 = vld [vmem:[%s1 + $0x850] sm:$0xff]
    %v312 = vld [vmem:[%s1 + $0x858] sm:$0xff]
    %v313 = vld [vmem:[%s1 + $0x860] sm:$0xff]
    %v314 = vld [vmem:[%s1 + $0x868] sm:$0xff]
    %v315 = vld [vmem:[%s1 + $0x870] sm:$0xff]
    %v316 = vld [vmem:[%s1 + $0x878] sm:$0xff]
    %v317 = vld [vmem:[%s1 + $0x880] sm:$0xff]
    %v318 = vld [vmem:[%s1 + $0x888] sm:$0xff]
    %v319 = vld [vmem:[%s1 + $0x890] sm:$0xff]
    %v320 = vld [vmem:[%s1 + $0x898] sm:$0xff]
    %v321 = vld [vmem:[%s1 + $0x8a0] sm:$0xff]
    %v322 = vld [vmem:[%s1 + $0x8a8] sm:$0xff]
    %v323 = vld [vmem:[%s1 + $0x8b0] sm:$0xff]
    %v324 = vld [vmem:[%s1 + $0x8b8] sm:$0xff]
    %v325 = vld [vmem:[%s1 + $0x8c0] sm:$0xff]
    %v326 = vld [vmem:[%s1 + $0x8c8] sm:$0xff]
    %v327 = vld [vmem:[%s1 + $0x8d0] sm:$0xff]
    %v328 = vld [vmem:[%s1 + $0x8d8] sm:$0xff]
    %v329 = vld [vmem:[%s1 + $0x8e0] sm:$0xff]
    %v330 = vld [vmem:[%s1 + $0x8e8] sm:$0xff]
    %v331 = vld [vmem:[%s1 + $0x8f0] sm:$0xff]
    %v332 = vld [vmem:[%s1 + $0x8f8] sm:$0xff]
    %v333 = vld [vmem:[%s1 + $0x900] sm:$0xff]
    %v334 = vld [vmem:[%s1 + $0x908] sm:$0xff]
    %v335 = vld [vmem:[%s1 + $0x910] sm:$0xff]
    %v336 = vld [vmem:[%s1 + $0x918] sm:$0xff]
    %v337 = vld [vmem:[%s1 + $0x920] sm:$0xff]
    %v338 = vld [vmem:[%s1 + $0x928] sm:$0xff]
    %v339 = vld [vmem:[%s1 + $0x930] sm:$0xff]
    %v340 = vld [vmem:[%s1 + $0x938] sm:$0xff]
    %v341 = vld [vmem:[%s1 + $0x940] sm:$0xff]
    %v342 = vld [vmem:[%s1 + $0x948] sm:$0xff]
    %v343 = vld [vmem:[%s1 + $0x950] sm:$0xff]
    %v344 = vld [vmem:[%s1 + $0x958] sm:$0xff]
    %v345 = vld [vmem:[%s1 + $0x960] sm:$0xff]
    %v346 = vld [vmem:[%s1 + $0x968] sm:$0xff]
    %v347 = vld [vmem:[%s1 + $0x970] sm:$0xff]
    %v348 = vld [vmem:[%s1 + $0x978] sm:$0xff]
    %v349 = vld [vmem:[%s1 + $0x980] sm:$0xff]
    %v350 = vld [vmem:[%s1 + $0x988] sm:$0xff]
    %v351 = vld [vmem:[%s1 + $0x990] sm:$0xff]
    %v352 = vld [vmem:[%s1 + $0x998] sm:$0xff]
    %v353 = vld [vmem:[%s1 + $0x9a0] sm:$0xff]
    %v354 = vld [vmem:[%s1 + $0x9a8] sm:$0xff]
    %v355 = vld [vmem:[%s1 + $0x9b0] sm:$0xff]
    %v356 = vld [vmem:[%s1 + $0x9b8] sm:$0xff]
    %v357 = vld [vmem:[%s1 + $0x9c0] sm:$0xff]
    %v358 = vld [vmem:[%s1 + $0x9c8] sm:$0xff]
    %v359 = vld [vmem:[%s1 + $0x9d0] sm:$0xff]
    %v360 = vld [vmem:[%s1 + $0x9d8] sm:$0xff]
    %v361 = vld [vmem:[%s1 + $0x9e0] sm:$0xff]
    %v362 = vld [vmem:[%s1 + $0x9e8] sm:$0xff]
    %v363 = vld [vmem:[%s1 + $0x9f0] sm:$0xff]
    %v364 = vld [vmem:[%s1 + $0x9f8] sm:$0xff]
    %v365 = vld [vmem:[%s1 + $0xa00] sm:$0xff]
    %v366 = vld [vmem:[%s1 + $0xa08] sm:$0xff]
    %v367 = vld [vmem:[%s1 + $0xa10] sm:$0xff]
    %v368 = vld [vmem:[%s1 + $0xa18] sm:$0xff]
    %v369 = vld [vmem:[%s1 + $0xa20] sm:$0xff]
    %v370 = vld [vmem:[%s1 + $0xa28] sm:$0xff]
    %v371 = vld [vmem:[%s1 + $0xa30] sm:$0xff]
    %v372 = vld [vmem:[%s1 + $0xa38] sm:$0xff]
    %v373 = vld [vmem:[%s1 + $0xa40] sm:$0xff]
    %v374 = vld [vmem:[%s1 + $0xa48] sm:$0xff]
    %v375 = vld [vmem:[%s1 + $0xa50] sm:$0xff]
    %v376 = vld [vmem:[%s1 + $0xa58] sm:$0xff]
    %v377 = vld [vmem:[%s1 + $0xa60] sm:$0xff]
    %v378 = vld [vmem:[%s1 + $0xa68] sm:$0xff]
    %v379 = vld [vmem:[%s1 + $0xa70] sm:$0xff]
    %v380 = vld [vmem:[%s1 + $0xa78] sm:$0xff]
    %v381 = vld [vmem:[%s1 + $0xa80] sm:$0xff]
    %v382 = vld [vmem:[%s1 + $0xa88] sm:$0xff]
    %v383 = vld [vmem:[%s1 + $0xa90] sm:$0xff]
    %v384 = vld [vmem:[%s1 + $0xa98] sm:$0xff]
    %v385 = vld [vmem:[%s1 + $0xaa0] sm:$0xff]
    %v386 = vld [vmem:[%s1 + $0xaa8] sm:$0xff]
    %v387 = vld [vmem:[%s1 + $0xab0] sm:$0xff]
    %v388 = vld [vmem:[%s1 + $0xab8] sm:$0xff]
    %v389 = vld [vmem:[%s1 + $0xac0] sm:$0xff]
    %v390 = vld [vmem:[%s1 + $0xac8] sm:$0xff]
    %v391 = vld [vmem:[%s1 + $0xad0] sm:$0xff]
    %v392 = vld [vmem:[%s1 + $0xad8] sm:$0xff]
    %v393 = vld [vmem:[%s1 + $0xae0] sm:$0xff]
    %v394 = vld [vmem:[%s1 + $0xae8] sm:$0xff]
    %v395 = vld [vmem:[%s1 + $0xaf0] sm:$0xff]
    %v396 = vld [vmem:[%s1 + $0xaf8] sm:$0xff]
    %v397 = vld [vmem:[%s1 + $0xb00] sm:$0xff]
    %v398 = vld [vmem:[%s1 + $0xb08] sm:$0xff]
    %v399 = vld [vmem:[%s1 + $0xb10] sm:$0xff]
    %v400 = vld [vmem:[%s1 + $0xb18] sm:$0xff]
    %v401 = vld [vmem:[%s1 + $0xb20] sm:$0xff]
    %v402 = vld [vmem:[%s1 + $0xb28] sm:$0xff]
    %v403 = vld [vmem:[%s1 + $0xb30] sm:$0xff]
    %v404 = vld [vmem:[%s1 + $0xb38] sm:$0xff]
    %v405 = vld [vmem:[%s1 + $0xb40] sm:$0xff]
    %v406 = vld [vmem:[%s1 + $0xb48] sm:$0xff]
    %v407 = vld [vmem:[%s1 + $0xb50] sm:$0xff]
    %v408 = vld [vmem:[%s1 + $0xb58] sm:$0xff]
    %v409 = vld [vmem:[%s1 + $0xb60] sm:$0xff]
    %v410 = vld [vmem:[%s1 + $0xb68] sm:$0xff]
    %v411 = vld [vmem:[%s1 + $0xb70] sm:$0xff]
    %v412 = vld [vmem:[%s1 + $0xb78] sm:$0xff]
    %v413 = vld [vmem:[%s1 + $0xb80] sm:$0xff]
    %v414 = vld [vmem:[%s1 + $0xb88] sm:$0xff]
    %v415 = vld [vmem:[%s1 + $0xb90] sm:$0xff]
    %v416 = vld [vmem:[%s1 + $0xb98] sm:$0xff]
    %v417 = vld [vmem:[%s1 + $0xba0] sm:$0xff]
    %v418 = vld [vmem:[%s1 + $0xba8] sm:$0xff]
    %v419 = vld [vmem:[%s1 + $0xbb0] sm:$0xff]
    %v420 = vld [vmem:[%s1 + $0xbb8] sm:$0xff]
    %v421 = vld [vmem:[%s1 + $0xbc0] sm:$0xff]
    %v422 = vld [vmem:[%s1 + $0xbc8] sm:$0xff]
    %v423 = vld [vmem:[%s1 + $0xbd0] sm:$0xff]
    %v424 = vld [vmem:[%s1 + $0xbd8] sm:$0xff]
    %v425 = vld [vmem:[%s1 + $0xbe0] sm:$0xff]
    %v426 = vld [vmem:[%s1 + $0xbe8] sm:$0xff]
    %v427 = vld [vmem:[%s1 + $0xbf0] sm:$0xff]
    %v428 = vld [vmem:[%s1 + $0xbf8] sm:$0xff]
    %v429 = vld [vmem:[%s2] sm:$0x1]
    %v431 = vlaneseq
    %v432 = vshrl.u32 %v431, 7
    %v433 = vsub.s32 0, %v432
    %v434 = vrot.slane %v429, %v433
    %436 = vmatprep.subr.mxu0 0.0
    %437 = vmatpush1.msra.mxu0 %v60
    %438 = vmatprep.subr.mxu0 0.0
    %439 = vmatpush1.msra.mxu0 %v59
    %440 = vmatprep.subr.mxu0 0.0
    %441 = vmatpush1.msra.mxu0 %v58
    %442 = vmatprep.subr.mxu0 0.0
    %443 = vmatpush1.msra.mxu0 %v57
    %444 = vmatprep.subr.mxu0 0.0
    %445 = vmatpush1.msra.mxu0 %v56
    %446 = vmatprep.subr.mxu0 0.0
    %447 = vmatpush1.msra.mxu0 %v55
    %448 = vmatprep.subr.mxu0 0.0
    %449 = vmatpush1.msra.mxu0 %v54
    %450 = vmatprep.subr.mxu0 0.0
    %451 = vmatpush1.msra.mxu0 %v53
    %452 = vmatprep.subr.mxu0 0.0
    %453 = vmatpush1.msra.mxu0 %v52
    %454 = vmatprep.subr.mxu0 0.0
    %455 = vmatpush1.msra.mxu0 %v51
    %456 = vmatprep.subr.mxu0 0.0
    %457 = vmatpush1.msra.mxu0 %v50
    %458 = vmatprep.subr.mxu0 0.0
    %459 = vmatpush1.msra.mxu0 %v49
    %460 = vmatprep.subr.mxu0 0.0
    %461 = vmatpush1.msra.mxu0 %v48
    %462 = vmatprep.subr.mxu0 0.0
    %463 = vmatpush1.msra.mxu0 %v47
    %464 = vmatprep.subr.mxu0 0.0
    %465 = vmatpush1.msra.mxu0 %v46
    %466 = vmatprep.subr.mxu0 0.0
    %467 = vmatpush1.msra.mxu0 %v45
    %468 = vmatprep.subr.mxu0 0.0
    %469 = vmatpush2.msra.mxu0 %v76
    %470 = vmatprep.subr.mxu0 0.0
    %471 = vmatpush2.msra.mxu0 %v75
    %472 = vmatprep.subr.mxu0 0.0
    %473 = vmatpush2.msra.mxu0 %v74
    %474 = vmatprep.subr.mxu0 0.0
    %475 = vmatpush2.msra.mxu0 %v73
    %476 = vmatprep.subr.mxu0 0.0
    %477 = vmatpush2.msra.mxu0 %v72
    %478 = vmatprep.subr.mxu0 0.0
    %479 = vmatpush2.msra.mxu0 %v71
    %480 = vmatprep.subr.mxu0 0.0
    %481 = vmatpush2.msra.mxu0 %v70
    %482 = vmatprep.subr.mxu0 0.0
    %483 = vmatpush2.msra.mxu0 %v69
    %484 = vmatprep.subr.mxu0 0.0
    %485 = vmatpush2.msra.mxu0 %v68
    %486 = vmatprep.subr.mxu0 0.0
    %487 = vmatpush2.msra.mxu0 %v67
    %488 = vmatprep.subr.mxu0 0.0
    %489 = vmatpush2.msra.mxu0 %v66
    %490 = vmatprep.subr.mxu0 0.0
    %491 = vmatpush2.msra.mxu0 %v65
    %492 = vmatprep.subr.mxu0 0.0
    %493 = vmatpush2.msra.mxu0 %v64
    %494 = vmatprep.subr.mxu0 0.0
    %495 = vmatpush2.msra.mxu0 %v63
    %496 = vmatprep.subr.mxu0 0.0
    %497 = vmatpush2.msra.mxu0 %v62
    %498 = vmatprep.subr.mxu0 0.0
    %499 = vmatpush2.msra.mxu0 %v61
    %500 = vmatprep.mubr.f32.mxu0 %v22
    %501 = vmatmul.mubr.f32.gmra.mxu0 %v21
    %v502 = vpop.f32.mrf.mxu0
    %v503 = vadd.f32 %v434, %v502
    %v504 = vpop.f32.mrf.mxu0
    %505 = vdwg.mxu0
    %506 = vmatprep.subr.mxu0 0.0
    %507 = vmatpush1.msra.mxu0 %v92
    %508 = vmatprep.subr.mxu0 0.0
    %509 = vmatpush1.msra.mxu0 %v91
    %510 = vmatprep.subr.mxu0 0.0
    %511 = vmatpush1.msra.mxu0 %v90
    %512 = vmatprep.subr.mxu0 0.0
    %513 = vmatpush1.msra.mxu0 %v89
    %514 = vmatprep.subr.mxu0 0.0
    %515 = vmatpush1.msra.mxu0 %v88
    %516 = vmatprep.subr.mxu0 0.0
    %517 = vmatpush1.msra.mxu0 %v87
    %518 = vmatprep.subr.mxu0 0.0
    %519 = vmatpush1.msra.mxu0 %v86
    %520 = vmatprep.subr.mxu0 0.0
    %521 = vmatpush1.msra.mxu0 %v85
    %522 = vmatprep.subr.mxu0 0.0
    %523 = vmatpush1.msra.mxu0 %v84
    %524 = vmatprep.subr.mxu0 0.0
    %525 = vmatpush1.msra.mxu0 %v83
    %526 = vmatprep.subr.mxu0 0.0
    %527 = vmatpush1.msra.mxu0 %v82
    %528 = vmatprep.subr.mxu0 0.0
    %529 = vmatpush1.msra.mxu0 %v81
    %530 = vmatprep.subr.mxu0 0.0
    %531 = vmatpush1.msra.mxu0 %v80
    %532 = vmatprep.subr.mxu0 0.0
    %533 = vmatpush1.msra.mxu0 %v79
    %534 = vmatprep.subr.mxu0 0.0
    %535 = vmatpush1.msra.mxu0 %v78
    %536 = vmatprep.subr.mxu0 0.0
    %537 = vmatpush1.msra.mxu0 %v77
    %538 = vmatprep.subr.mxu0 0.0
    %539 = vmatpush2.msra.mxu0 %v108
    %540 = vmatprep.subr.mxu0 0.0
    %541 = vmatpush2.msra.mxu0 %v107
    %542 = vmatprep.subr.mxu0 0.0
    %543 = vmatpush2.msra.mxu0 %v106
    %544 = vmatprep.subr.mxu0 0.0
    %545 = vmatpush2.msra.mxu0 %v105
    %546 = vmatprep.subr.mxu0 0.0
    %547 = vmatpush2.msra.mxu0 %v104
    %548 = vmatprep.subr.mxu0 0.0
    %549 = vmatpush2.msra.mxu0 %v103
    %550 = vmatprep.subr.mxu0 0.0
    %551 = vmatpush2.msra.mxu0 %v102
    %552 = vmatprep.subr.mxu0 0.0
    %553 = vmatpush2.msra.mxu0 %v101
    %554 = vmatprep.subr.mxu0 0.0
    %555 = vmatpush2.msra.mxu0 %v100
    %556 = vmatprep.subr.mxu0 0.0
    %557 = vmatpush2.msra.mxu0 %v99
    %558 = vmatprep.subr.mxu0 0.0
    %559 = vmatpush2.msra.mxu0 %v98
    %560 = vmatprep.subr.mxu0 0.0
    %561 = vmatpush2.msra.mxu0 %v97
    %562 = vmatprep.subr.mxu0 0.0
    %563 = vmatpush2.msra.mxu0 %v96
    %564 = vmatprep.subr.mxu0 0.0
    %565 = vmatpush2.msra.mxu0 %v95
    %566 = vmatprep.subr.mxu0 0.0
    %567 = vmatpush2.msra.mxu0 %v94
    %568 = vmatprep.subr.mxu0 0.0
    %569 = vmatpush2.msra.mxu0 %v93
    %570 = vmatprep.mubr.f32.mxu0 %v24
    %571 = vmatmul.mubr.f32.gmra.mxu0 %v23
    %v572 = vpop.f32.mrf.mxu0
    %v573 = vadd.f32 %v503, %v572
    %v574 = vpop.f32.mrf.mxu0
    %575 = vdwg.mxu0
    %576 = vmatprep.subr.mxu0 0.0
    %577 = vmatpush1.msra.mxu0 %v124
    %578 = vmatprep.subr.mxu0 0.0
    %579 = vmatpush1.msra.mxu0 %v123
    %580 = vmatprep.subr.mxu0 0.0
    %581 = vmatpush1.msra.mxu0 %v122
    %582 = vmatprep.subr.mxu0 0.0
    %583 = vmatpush1.msra.mxu0 %v121
    %584 = vmatprep.subr.mxu0 0.0
    %585 = vmatpush1.msra.mxu0 %v120
    %586 = vmatprep.subr.mxu0 0.0
    %587 = vmatpush1.msra.mxu0 %v119
    %588 = vmatprep.subr.mxu0 0.0
    %589 = vmatpush1.msra.mxu0 %v118
    %590 = vmatprep.subr.mxu0 0.0
    %591 = vmatpush1.msra.mxu0 %v117
    %592 = vmatprep.subr.mxu0 0.0
    %593 = vmatpush1.msra.mxu0 %v116
    %594 = vmatprep.subr.mxu0 0.0
    %595 = vmatpush1.msra.mxu0 %v115
    %596 = vmatprep.subr.mxu0 0.0
    %597 = vmatpush1.msra.mxu0 %v114
    %598 = vmatprep.subr.mxu0 0.0
    %599 = vmatpush1.msra.mxu0 %v113
    %600 = vmatprep.subr.mxu0 0.0
    %601 = vmatpush1.msra.mxu0 %v112
    %602 = vmatprep.subr.mxu0 0.0
    %603 = vmatpush1.msra.mxu0 %v111
    %604 = vmatprep.subr.mxu0 0.0
    %605 = vmatpush1.msra.mxu0 %v110
    %606 = vmatprep.subr.mxu0 0.0
    %607 = vmatpush1.msra.mxu0 %v109
    %608 = vmatprep.subr.mxu0 0.0
    %609 = vmatpush2.msra.mxu0 %v140
    %610 = vmatprep.subr.mxu0 0.0
    %611 = vmatpush2.msra.mxu0 %v139
    %612 = vmatprep.subr.mxu0 0.0
    %613 = vmatpush2.msra.mxu0 %v138
    %614 = vmatprep.subr.mxu0 0.0
    %615 = vmatpush2.msra.mxu0 %v137
    %616 = vmatprep.subr.mxu0 0.0
    %617 = vmatpush2.msra.mxu0 %v136
    %618 = vmatprep.subr.mxu0 0.0
    %619 = vmatpush2.msra.mxu0 %v135
    %620 = vmatprep.subr.mxu0 0.0
    %621 = vmatpush2.msra.mxu0 %v134
    %622 = vmatprep.subr.mxu0 0.0
    %623 = vmatpush2.msra.mxu0 %v133
    %624 = vmatprep.subr.mxu0 0.0
    %625 = vmatpush2.msra.mxu0 %v132
    %626 = vmatprep.subr.mxu0 0.0
    %627 = vmatpush2.msra.mxu0 %v131
    %628 = vmatprep.subr.mxu0 0.0
    %629 = vmatpush2.msra.mxu0 %v130
    %630 = vmatprep.subr.mxu0 0.0
    %631 = vmatpush2.msra.mxu0 %v129
    %632 = vmatprep.subr.mxu0 0.0
    %633 = vmatpush2.msra.mxu0 %v128
    %634 = vmatprep.subr.mxu0 0.0
    %635 = vmatpush2.msra.mxu0 %v127
    %636 = vmatprep.subr.mxu0 0.0
    %637 = vmatpush2.msra.mxu0 %v126
    %638 = vmatprep.subr.mxu0 0.0
    %639 = vmatpush2.msra.mxu0 %v125
    %640 = vmatprep.mubr.f32.mxu0 %v26
    %641 = vmatmul.mubr.f32.gmra.mxu0 %v25
    %v642 = vpop.f32.mrf.mxu0
    %v643 = vadd.f32 %v573, %v642
    %v644 = vpop.f32.mrf.mxu0
    %645 = vdwg.mxu0
    %646 = vmatprep.subr.mxu0 0.0
    %647 = vmatpush1.msra.mxu0 %v156
    %648 = vmatprep.subr.mxu0 0.0
    %649 = vmatpush1.msra.mxu0 %v155
    %650 = vmatprep.subr.mxu0 0.0
    %651 = vmatpush1.msra.mxu0 %v154
    %652 = vmatprep.subr.mxu0 0.0
    %653 = vmatpush1.msra.mxu0 %v153
    %654 = vmatprep.subr.mxu0 0.0
    %655 = vmatpush1.msra.mxu0 %v152
    %656 = vmatprep.subr.mxu0 0.0
    %657 = vmatpush1.msra.mxu0 %v151
    %658 = vmatprep.subr.mxu0 0.0
    %659 = vmatpush1.msra.mxu0 %v150
    %660 = vmatprep.subr.mxu0 0.0
    %661 = vmatpush1.msra.mxu0 %v149
    %662 = vmatprep.subr.mxu0 0.0
    %663 = vmatpush1.msra.mxu0 %v148
    %664 = vmatprep.subr.mxu0 0.0
    %665 = vmatpush1.msra.mxu0 %v147
    %666 = vmatprep.subr.mxu0 0.0
    %667 = vmatpush1.msra.mxu0 %v146
    %668 = vmatprep.subr.mxu0 0.0
    %669 = vmatpush1.msra.mxu0 %v145
    %670 = vmatprep.subr.mxu0 0.0
    %671 = vmatpush1.msra.mxu0 %v144
    %672 = vmatprep.subr.mxu0 0.0
    %673 = vmatpush1.msra.mxu0 %v143
    %674 = vmatprep.subr.mxu0 0.0
    %675 = vmatpush1.msra.mxu0 %v142
    %676 = vmatprep.subr.mxu0 0.0
    %677 = vmatpush1.msra.mxu0 %v141
    %678 = vmatprep.subr.mxu0 0.0
    %679 = vmatpush2.msra.mxu0 %v172
    %680 = vmatprep.subr.mxu0 0.0
    %681 = vmatpush2.msra.mxu0 %v171
    %682 = vmatprep.subr.mxu0 0.0
    %683 = vmatpush2.msra.mxu0 %v170
    %684 = vmatprep.subr.mxu0 0.0
    %685 = vmatpush2.msra.mxu0 %v169
    %686 = vmatprep.subr.mxu0 0.0
    %687 = vmatpush2.msra.mxu0 %v168
    %688 = vmatprep.subr.mxu0 0.0
    %689 = vmatpush2.msra.mxu0 %v167
    %690 = vmatprep.subr.mxu0 0.0
    %691 = vmatpush2.msra.mxu0 %v166
    %692 = vmatprep.subr.mxu0 0.0
    %693 = vmatpush2.msra.mxu0 %v165
    %694 = vmatprep.subr.mxu0 0.0
    %695 = vmatpush2.msra.mxu0 %v164
    %696 = vmatprep.subr.mxu0 0.0
    %697 = vmatpush2.msra.mxu0 %v163
    %698 = vmatprep.subr.mxu0 0.0
    %699 = vmatpush2.msra.mxu0 %v162
    %700 = vmatprep.subr.mxu0 0.0
    %701 = vmatpush2.msra.mxu0 %v161
    %702 = vmatprep.subr.mxu0 0.0
    %703 = vmatpush2.msra.mxu0 %v160
    %704 = vmatprep.subr.mxu0 0.0
    %705 = vmatpush2.msra.mxu0 %v159
    %706 = vmatprep.subr.mxu0 0.0
    %707 = vmatpush2.msra.mxu0 %v158
    %708 = vmatprep.subr.mxu0 0.0
    %709 = vmatpush2.msra.mxu0 %v157
    %710 = vmatprep.mubr.f32.mxu0 %v28
    %711 = vmatmul.mubr.f32.gmra.mxu0 %v27
    %v712 = vpop.f32.mrf.mxu0
    %v713 = vadd.f32 %v643, %v712
    %v714 = vpop.f32.mrf.mxu0
    %715 = vdwg.mxu0
    %716 = vmatprep.subr.mxu0 0.0
    %717 = vmatpush1.msra.mxu0 %v188
    %718 = vmatprep.subr.mxu0 0.0
    %719 = vmatpush1.msra.mxu0 %v187
    %720 = vmatprep.subr.mxu0 0.0
    %721 = vmatpush1.msra.mxu0 %v186
    %722 = vmatprep.subr.mxu0 0.0
    %723 = vmatpush1.msra.mxu0 %v185
    %724 = vmatprep.subr.mxu0 0.0
    %725 = vmatpush1.msra.mxu0 %v184
    %726 = vmatprep.subr.mxu0 0.0
    %727 = vmatpush1.msra.mxu0 %v183
    %728 = vmatprep.subr.mxu0 0.0
    %729 = vmatpush1.msra.mxu0 %v182
    %730 = vmatprep.subr.mxu0 0.0
    %731 = vmatpush1.msra.mxu0 %v181
    %732 = vmatprep.subr.mxu0 0.0
    %733 = vmatpush1.msra.mxu0 %v180
    %734 = vmatprep.subr.mxu0 0.0
    %735 = vmatpush1.msra.mxu0 %v179
    %736 = vmatprep.subr.mxu0 0.0
    %737 = vmatpush1.msra.mxu0 %v178
    %738 = vmatprep.subr.mxu0 0.0
    %739 = vmatpush1.msra.mxu0 %v177
    %740 = vmatprep.subr.mxu0 0.0
    %741 = vmatpush1.msra.mxu0 %v176
    %742 = vmatprep.subr.mxu0 0.0
    %743 = vmatpush1.msra.mxu0 %v175
    %744 = vmatprep.subr.mxu0 0.0
    %745 = vmatpush1.msra.mxu0 %v174
    %746 = vmatprep.subr.mxu0 0.0
    %747 = vmatpush1.msra.mxu0 %v173
    %748 = vmatprep.subr.mxu0 0.0
    %749 = vmatpush2.msra.mxu0 %v204
    %750 = vmatprep.subr.mxu0 0.0
    %751 = vmatpush2.msra.mxu0 %v203
    %752 = vmatprep.subr.mxu0 0.0
    %753 = vmatpush2.msra.mxu0 %v202
    %754 = vmatprep.subr.mxu0 0.0
    %755 = vmatpush2.msra.mxu0 %v201
    %756 = vmatprep.subr.mxu0 0.0
    %757 = vmatpush2.msra.mxu0 %v200
    %758 = vmatprep.subr.mxu0 0.0
    %759 = vmatpush2.msra.mxu0 %v199
    %760 = vmatprep.subr.mxu0 0.0
    %761 = vmatpush2.msra.mxu0 %v198
    %762 = vmatprep.subr.mxu0 0.0
    %763 = vmatpush2.msra.mxu0 %v197
    %764 = vmatprep.subr.mxu0 0.0
    %765 = vmatpush2.msra.mxu0 %v196
    %766 = vmatprep.subr.mxu0 0.0
    %767 = vmatpush2.msra.mxu0 %v195
    %768 = vmatprep.subr.mxu0 0.0
    %769 = vmatpush2.msra.mxu0 %v194
    %770 = vmatprep.subr.mxu0 0.0
    %771 = vmatpush2.msra.mxu0 %v193
    %772 = vmatprep.subr.mxu0 0.0
    %773 = vmatpush2.msra.mxu0 %v192
    %774 = vmatprep.subr.mxu0 0.0
    %775 = vmatpush2.msra.mxu0 %v191
    %776 = vmatprep.subr.mxu0 0.0
    %777 = vmatpush2.msra.mxu0 %v190
    %778 = vmatprep.subr.mxu0 0.0
    %779 = vmatpush2.msra.mxu0 %v189
    %780 = vmatprep.mubr.f32.mxu0 %v30
    %781 = vmatmul.mubr.f32.gmra.mxu0 %v29
    %v782 = vpop.f32.mrf.mxu0
    %v783 = vadd.f32 %v713, %v782
    %v784 = vpop.f32.mrf.mxu0
    %785 = vdwg.mxu0
    %786 = vmatprep.subr.mxu0 0.0
    %787 = vmatpush1.msra.mxu0 %v220
    %788 = vmatprep.subr.mxu0 0.0
    %789 = vmatpush1.msra.mxu0 %v219
    %790 = vmatprep.subr.mxu0 0.0
    %791 = vmatpush1.msra.mxu0 %v218
    %792 = vmatprep.subr.mxu0 0.0
    %793 = vmatpush1.msra.mxu0 %v217
    %794 = vmatprep.subr.mxu0 0.0
    %795 = vmatpush1.msra.mxu0 %v216
    %796 = vmatprep.subr.mxu0 0.0
    %797 = vmatpush1.msra.mxu0 %v215
    %798 = vmatprep.subr.mxu0 0.0
    %799 = vmatpush1.msra.mxu0 %v214
    %800 = vmatprep.subr.mxu0 0.0
    %801 = vmatpush1.msra.mxu0 %v213
    %802 = vmatprep.subr.mxu0 0.0
    %803 = vmatpush1.msra.mxu0 %v212
    %804 = vmatprep.subr.mxu0 0.0
    %805 = vmatpush1.msra.mxu0 %v211
    %806 = vmatprep.subr.mxu0 0.0
    %807 = vmatpush1.msra.mxu0 %v210
    %808 = vmatprep.subr.mxu0 0.0
    %809 = vmatpush1.msra.mxu0 %v209
    %810 = vmatprep.subr.mxu0 0.0
    %811 = vmatpush1.msra.mxu0 %v208
    %812 = vmatprep.subr.mxu0 0.0
    %813 = vmatpush1.msra.mxu0 %v207
    %814 = vmatprep.subr.mxu0 0.0
    %815 = vmatpush1.msra.mxu0 %v206
    %816 = vmatprep.subr.mxu0 0.0
    %817 = vmatpush1.msra.mxu0 %v205
    %818 = vmatprep.subr.mxu0 0.0
    %819 = vmatpush2.msra.mxu0 %v236
    %820 = vmatprep.subr.mxu0 0.0
    %821 = vmatpush2.msra.mxu0 %v235
    %822 = vmatprep.subr.mxu0 0.0
    %823 = vmatpush2.msra.mxu0 %v234
    %824 = vmatprep.subr.mxu0 0.0
    %825 = vmatpush2.msra.mxu0 %v233
    %826 = vmatprep.subr.mxu0 0.0
    %827 = vmatpush2.msra.mxu0 %v232
    %828 = vmatprep.subr.mxu0 0.0
    %829 = vmatpush2.msra.mxu0 %v231
    %830 = vmatprep.subr.mxu0 0.0
    %831 = vmatpush2.msra.mxu0 %v230
    %832 = vmatprep.subr.mxu0 0.0
    %833 = vmatpush2.msra.mxu0 %v229
    %834 = vmatprep.subr.mxu0 0.0
    %835 = vmatpush2.msra.mxu0 %v228
    %836 = vmatprep.subr.mxu0 0.0
    %837 = vmatpush2.msra.mxu0 %v227
    %838 = vmatprep.subr.mxu0 0.0
    %839 = vmatpush2.msra.mxu0 %v226
    %840 = vmatprep.subr.mxu0 0.0
    %841 = vmatpush2.msra.mxu0 %v225
    %842 = vmatprep.subr.mxu0 0.0
    %843 = vmatpush2.msra.mxu0 %v224
    %844 = vmatprep.subr.mxu0 0.0
    %845 = vmatpush2.msra.mxu0 %v223
    %846 = vmatprep.subr.mxu0 0.0
    %847 = vmatpush2.msra.mxu0 %v222
    %848 = vmatprep.subr.mxu0 0.0
    %849 = vmatpush2.msra.mxu0 %v221
    %850 = vmatprep.mubr.f32.mxu0 %v32
    %851 = vmatmul.mubr.f32.gmra.mxu0 %v31
    %v852 = vpop.f32.mrf.mxu0
    %v853 = vadd.f32 %v783, %v852
    %v854 = vpop.f32.mrf.mxu0
    %855 = vdwg.mxu0
    %856 = vmatprep.subr.mxu0 0.0
    %857 = vmatpush1.msra.mxu0 %v252
    %858 = vmatprep.subr.mxu0 0.0
    %859 = vmatpush1.msra.mxu0 %v251
    %860 = vmatprep.subr.mxu0 0.0
    %861 = vmatpush1.msra.mxu0 %v250
    %862 = vmatprep.subr.mxu0 0.0
    %863 = vmatpush1.msra.mxu0 %v249
    %864 = vmatprep.subr.mxu0 0.0
    %865 = vmatpush1.msra.mxu0 %v248
    %866 = vmatprep.subr.mxu0 0.0
    %867 = vmatpush1.msra.mxu0 %v247
    %868 = vmatprep.subr.mxu0 0.0
    %869 = vmatpush1.msra.mxu0 %v246
    %870 = vmatprep.subr.mxu0 0.0
    %871 = vmatpush1.msra.mxu0 %v245
    %872 = vmatprep.subr.mxu0 0.0
    %873 = vmatpush1.msra.mxu0 %v244
    %874 = vmatprep.subr.mxu0 0.0
    %875 = vmatpush1.msra.mxu0 %v243
    %876 = vmatprep.subr.mxu0 0.0
    %877 = vmatpush1.msra.mxu0 %v242
    %878 = vmatprep.subr.mxu0 0.0
    %879 = vmatpush1.msra.mxu0 %v241
    %880 = vmatprep.subr.mxu0 0.0
    %881 = vmatpush1.msra.mxu0 %v240
    %882 = vmatprep.subr.mxu0 0.0
    %883 = vmatpush1.msra.mxu0 %v239
    %884 = vmatprep.subr.mxu0 0.0
    %885 = vmatpush1.msra.mxu0 %v238
    %886 = vmatprep.subr.mxu0 0.0
    %887 = vmatpush1.msra.mxu0 %v237
    %888 = vmatprep.subr.mxu0 0.0
    %889 = vmatpush2.msra.mxu0 %v268
    %890 = vmatprep.subr.mxu0 0.0
    %891 = vmatpush2.msra.mxu0 %v267
    %892 = vmatprep.subr.mxu0 0.0
    %893 = vmatpush2.msra.mxu0 %v266
    %894 = vmatprep.subr.mxu0 0.0
    %895 = vmatpush2.msra.mxu0 %v265
    %896 = vmatprep.subr.mxu0 0.0
    %897 = vmatpush2.msra.mxu0 %v264
    %898 = vmatprep.subr.mxu0 0.0
    %899 = vmatpush2.msra.mxu0 %v263
    %900 = vmatprep.subr.mxu0 0.0
    %901 = vmatpush2.msra.mxu0 %v262
    %902 = vmatprep.subr.mxu0 0.0
    %903 = vmatpush2.msra.mxu0 %v261
    %904 = vmatprep.subr.mxu0 0.0
    %905 = vmatpush2.msra.mxu0 %v260
    %906 = vmatprep.subr.mxu0 0.0
    %907 = vmatpush2.msra.mxu0 %v259
    %908 = vmatprep.subr.mxu0 0.0
    %909 = vmatpush2.msra.mxu0 %v258
    %910 = vmatprep.subr.mxu0 0.0
    %911 = vmatpush2.msra.mxu0 %v257
    %912 = vmatprep.subr.mxu0 0.0
    %913 = vmatpush2.msra.mxu0 %v256
    %914 = vmatprep.subr.mxu0 0.0
    %915 = vmatpush2.msra.mxu0 %v255
    %916 = vmatprep.subr.mxu0 0.0
    %917 = vmatpush2.msra.mxu0 %v254
    %918 = vmatprep.subr.mxu0 0.0
    %919 = vmatpush2.msra.mxu0 %v253
    %920 = vmatprep.mubr.f32.mxu0 %v34
    %921 = vmatmul.mubr.f32.gmra.mxu0 %v33
    %v922 = vpop.f32.mrf.mxu0
    %v923 = vadd.f32 %v853, %v922
    %v924 = vpop.f32.mrf.mxu0
    %925 = vdwg.mxu0
    %926 = vmatprep.subr.mxu0 0.0
    %927 = vmatpush1.msra.mxu0 %v284
    %928 = vmatprep.subr.mxu0 0.0
    %929 = vmatpush1.msra.mxu0 %v283
    %930 = vmatprep.subr.mxu0 0.0
    %931 = vmatpush1.msra.mxu0 %v282
    %932 = vmatprep.subr.mxu0 0.0
    %933 = vmatpush1.msra.mxu0 %v281
    %934 = vmatprep.subr.mxu0 0.0
    %935 = vmatpush1.msra.mxu0 %v280
    %936 = vmatprep.subr.mxu0 0.0
    %937 = vmatpush1.msra.mxu0 %v279
    %938 = vmatprep.subr.mxu0 0.0
    %939 = vmatpush1.msra.mxu0 %v278
    %940 = vmatprep.subr.mxu0 0.0
    %941 = vmatpush1.msra.mxu0 %v277
    %942 = vmatprep.subr.mxu0 0.0
    %943 = vmatpush1.msra.mxu0 %v276
    %944 = vmatprep.subr.mxu0 0.0
    %945 = vmatpush1.msra.mxu0 %v275
    %946 = vmatprep.subr.mxu0 0.0
    %947 = vmatpush1.msra.mxu0 %v274
    %948 = vmatprep.subr.mxu0 0.0
    %949 = vmatpush1.msra.mxu0 %v273
    %950 = vmatprep.subr.mxu0 0.0
    %951 = vmatpush1.msra.mxu0 %v272
    %952 = vmatprep.subr.mxu0 0.0
    %953 = vmatpush1.msra.mxu0 %v271
    %954 = vmatprep.subr.mxu0 0.0
    %955 = vmatpush1.msra.mxu0 %v270
    %956 = vmatprep.subr.mxu0 0.0
    %957 = vmatpush1.msra.mxu0 %v269
    %958 = vmatprep.subr.mxu0 0.0
    %959 = vmatpush2.msra.mxu0 %v300
    %960 = vmatprep.subr.mxu0 0.0
    %961 = vmatpush2.msra.mxu0 %v299
    %962 = vmatprep.subr.mxu0 0.0
    %963 = vmatpush2.msra.mxu0 %v298
    %964 = vmatprep.subr.mxu0 0.0
    %965 = vmatpush2.msra.mxu0 %v297
    %966 = vmatprep.subr.mxu0 0.0
    %967 = vmatpush2.msra.mxu0 %v296
    %968 = vmatprep.subr.mxu0 0.0
    %969 = vmatpush2.msra.mxu0 %v295
    %970 = vmatprep.subr.mxu0 0.0
    %971 = vmatpush2.msra.mxu0 %v294
    %972 = vmatprep.subr.mxu0 0.0
    %973 = vmatpush2.msra.mxu0 %v293
    %974 = vmatprep.subr.mxu0 0.0
    %975 = vmatpush2.msra.mxu0 %v292
    %976 = vmatprep.subr.mxu0 0.0
    %977 = vmatpush2.msra.mxu0 %v291
    %978 = vmatprep.subr.mxu0 0.0
    %979 = vmatpush2.msra.mxu0 %v290
    %980 = vmatprep.subr.mxu0 0.0
    %981 = vmatpush2.msra.mxu0 %v289
    %982 = vmatprep.subr.mxu0 0.0
    %983 = vmatpush2.msra.mxu0 %v288
    %984 = vmatprep.subr.mxu0 0.0
    %985 = vmatpush2.msra.mxu0 %v287
    %986 = vmatprep.subr.mxu0 0.0
    %987 = vmatpush2.msra.mxu0 %v286
    %988 = vmatprep.subr.mxu0 0.0
    %989 = vmatpush2.msra.mxu0 %v285
    %990 = vmatprep.mubr.f32.mxu0 %v36
    %991 = vmatmul.mubr.f32.gmra.mxu0 %v35
    %v992 = vpop.f32.mrf.mxu0
    %v993 = vadd.f32 %v923, %v992
    %v994 = vpop.f32.mrf.mxu0
    %995 = vdwg.mxu0
    %996 = vmatprep.subr.mxu0 0.0
    %997 = vmatpush1.msra.mxu0 %v316
    %998 = vmatprep.subr.mxu0 0.0
    %999 = vmatpush1.msra.mxu0 %v315
    %1000 = vmatprep.subr.mxu0 0.0
    %1001 = vmatpush1.msra.mxu0 %v314
    %1002 = vmatprep.subr.mxu0 0.0
    %1003 = vmatpush1.msra.mxu0 %v313
    %1004 = vmatprep.subr.mxu0 0.0
    %1005 = vmatpush1.msra.mxu0 %v312
    %1006 = vmatprep.subr.mxu0 0.0
    %1007 = vmatpush1.msra.mxu0 %v311
    %1008 = vmatprep.subr.mxu0 0.0
    %1009 = vmatpush1.msra.mxu0 %v310
    %1010 = vmatprep.subr.mxu0 0.0
    %1011 = vmatpush1.msra.mxu0 %v309
    %1012 = vmatprep.subr.mxu0 0.0
    %1013 = vmatpush1.msra.mxu0 %v308
    %1014 = vmatprep.subr.mxu0 0.0
    %1015 = vmatpush1.msra.mxu0 %v307
    %1016 = vmatprep.subr.mxu0 0.0
    %1017 = vmatpush1.msra.mxu0 %v306
    %1018 = vmatprep.subr.mxu0 0.0
    %1019 = vmatpush1.msra.mxu0 %v305
    %1020 = vmatprep.subr.mxu0 0.0
    %1021 = vmatpush1.msra.mxu0 %v304
    %1022 = vmatprep.subr.mxu0 0.0
    %1023 = vmatpush1.msra.mxu0 %v303
    %1024 = vmatprep.subr.mxu0 0.0
    %1025 = vmatpush1.msra.mxu0 %v302
    %1026 = vmatprep.subr.mxu0 0.0
    %1027 = vmatpush1.msra.mxu0 %v301
    %1028 = vmatprep.subr.mxu0 0.0
    %1029 = vmatpush2.msra.mxu0 %v332
    %1030 = vmatprep.subr.mxu0 0.0
    %1031 = vmatpush2.msra.mxu0 %v331
    %1032 = vmatprep.subr.mxu0 0.0
    %1033 = vmatpush2.msra.mxu0 %v330
    %1034 = vmatprep.subr.mxu0 0.0
    %1035 = vmatpush2.msra.mxu0 %v329
    %1036 = vmatprep.subr.mxu0 0.0
    %1037 = vmatpush2.msra.mxu0 %v328
    %1038 = vmatprep.subr.mxu0 0.0
    %1039 = vmatpush2.msra.mxu0 %v327
    %1040 = vmatprep.subr.mxu0 0.0
    %1041 = vmatpush2.msra.mxu0 %v326
    %1042 = vmatprep.subr.mxu0 0.0
    %1043 = vmatpush2.msra.mxu0 %v325
    %1044 = vmatprep.subr.mxu0 0.0
    %1045 = vmatpush2.msra.mxu0 %v324
    %1046 = vmatprep.subr.mxu0 0.0
    %1047 = vmatpush2.msra.mxu0 %v323
    %1048 = vmatprep.subr.mxu0 0.0
    %1049 = vmatpush2.msra.mxu0 %v322
    %1050 = vmatprep.subr.mxu0 0.0
    %1051 = vmatpush2.msra.mxu0 %v321
    %1052 = vmatprep.subr.mxu0 0.0
    %1053 = vmatpush2.msra.mxu0 %v320
    %1054 = vmatprep.subr.mxu0 0.0
    %1055 = vmatpush2.msra.mxu0 %v319
    %1056 = vmatprep.subr.mxu0 0.0
    %1057 = vmatpush2.msra.mxu0 %v318
    %1058 = vmatprep.subr.mxu0 0.0
    %1059 = vmatpush2.msra.mxu0 %v317
    %1060 = vmatprep.mubr.f32.mxu0 %v38
    %1061 = vmatmul.mubr.f32.gmra.mxu0 %v37
    %v1062 = vpop.f32.mrf.mxu0
    %v1063 = vadd.f32 %v993, %v1062
    %v1064 = vpop.f32.mrf.mxu0
    %1065 = vdwg.mxu0
    %1066 = vmatprep.subr.mxu0 0.0
    %1067 = vmatpush1.msra.mxu0 %v348
    %1068 = vmatprep.subr.mxu0 0.0
    %1069 = vmatpush1.msra.mxu0 %v347
    %1070 = vmatprep.subr.mxu0 0.0
    %1071 = vmatpush1.msra.mxu0 %v346
    %1072 = vmatprep.subr.mxu0 0.0
    %1073 = vmatpush1.msra.mxu0 %v345
    %1074 = vmatprep.subr.mxu0 0.0
    %1075 = vmatpush1.msra.mxu0 %v344
    %1076 = vmatprep.subr.mxu0 0.0
    %1077 = vmatpush1.msra.mxu0 %v343
    %1078 = vmatprep.subr.mxu0 0.0
    %1079 = vmatpush1.msra.mxu0 %v342
    %1080 = vmatprep.subr.mxu0 0.0
    %1081 = vmatpush1.msra.mxu0 %v341
    %1082 = vmatprep.subr.mxu0 0.0
    %1083 = vmatpush1.msra.mxu0 %v340
    %1084 = vmatprep.subr.mxu0 0.0
    %1085 = vmatpush1.msra.mxu0 %v339
    %1086 = vmatprep.subr.mxu0 0.0
    %1087 = vmatpush1.msra.mxu0 %v338
    %1088 = vmatprep.subr.mxu0 0.0
    %1089 = vmatpush1.msra.mxu0 %v337
    %1090 = vmatprep.subr.mxu0 0.0
    %1091 = vmatpush1.msra.mxu0 %v336
    %1092 = vmatprep.subr.mxu0 0.0
    %1093 = vmatpush1.msra.mxu0 %v335
    %1094 = vmatprep.subr.mxu0 0.0
    %1095 = vmatpush1.msra.mxu0 %v334
    %1096 = vmatprep.subr.mxu0 0.0
    %1097 = vmatpush1.msra.mxu0 %v333
    %1098 = vmatprep.subr.mxu0 0.0
    %1099 = vmatpush2.msra.mxu0 %v364
    %1100 = vmatprep.subr.mxu0 0.0
    %1101 = vmatpush2.msra.mxu0 %v363
    %1102 = vmatprep.subr.mxu0 0.0
    %1103 = vmatpush2.msra.mxu0 %v362
    %1104 = vmatprep.subr.mxu0 0.0
    %1105 = vmatpush2.msra.mxu0 %v361
    %1106 = vmatprep.subr.mxu0 0.0
    %1107 = vmatpush2.msra.mxu0 %v360
    %1108 = vmatprep.subr.mxu0 0.0
    %1109 = vmatpush2.msra.mxu0 %v359
    %1110 = vmatprep.subr.mxu0 0.0
    %1111 = vmatpush2.msra.mxu0 %v358
    %1112 = vmatprep.subr.mxu0 0.0
    %1113 = vmatpush2.msra.mxu0 %v357
    %1114 = vmatprep.subr.mxu0 0.0
    %1115 = vmatpush2.msra.mxu0 %v356
    %1116 = vmatprep.subr.mxu0 0.0
    %1117 = vmatpush2.msra.mxu0 %v355
    %1118 = vmatprep.subr.mxu0 0.0
    %1119 = vmatpush2.msra.mxu0 %v354
    %1120 = vmatprep.subr.mxu0 0.0
    %1121 = vmatpush2.msra.mxu0 %v353
    %1122 = vmatprep.subr.mxu0 0.0
    %1123 = vmatpush2.msra.mxu0 %v352
    %1124 = vmatprep.subr.mxu0 0.0
    %1125 = vmatpush2.msra.mxu0 %v351
    %1126 = vmatprep.subr.mxu0 0.0
    %1127 = vmatpush2.msra.mxu0 %v350
    %1128 = vmatprep.subr.mxu0 0.0
    %1129 = vmatpush2.msra.mxu0 %v349
    %1130 = vmatprep.mubr.f32.mxu0 %v40
    %1131 = vmatmul.mubr.f32.gmra.mxu0 %v39
    %v1132 = vpop.f32.mrf.mxu0
    %v1133 = vadd.f32 %v1063, %v1132
    %v1134 = vpop.f32.mrf.mxu0
    %1135 = vdwg.mxu0
    %1136 = vmatprep.subr.mxu0 0.0
    %1137 = vmatpush1.msra.mxu0 %v380
    %1138 = vmatprep.subr.mxu0 0.0
    %1139 = vmatpush1.msra.mxu0 %v379
    %1140 = vmatprep.subr.mxu0 0.0
    %1141 = vmatpush1.msra.mxu0 %v378
    %1142 = vmatprep.subr.mxu0 0.0
    %1143 = vmatpush1.msra.mxu0 %v377
    %1144 = vmatprep.subr.mxu0 0.0
    %1145 = vmatpush1.msra.mxu0 %v376
    %1146 = vmatprep.subr.mxu0 0.0
    %1147 = vmatpush1.msra.mxu0 %v375
    %1148 = vmatprep.subr.mxu0 0.0
    %1149 = vmatpush1.msra.mxu0 %v374
    %1150 = vmatprep.subr.mxu0 0.0
    %1151 = vmatpush1.msra.mxu0 %v373
    %1152 = vmatprep.subr.mxu0 0.0
    %1153 = vmatpush1.msra.mxu0 %v372
    %1154 = vmatprep.subr.mxu0 0.0
    %1155 = vmatpush1.msra.mxu0 %v371
    %1156 = vmatprep.subr.mxu0 0.0
    %1157 = vmatpush1.msra.mxu0 %v370
    %1158 = vmatprep.subr.mxu0 0.0
    %1159 = vmatpush1.msra.mxu0 %v369
    %1160 = vmatprep.subr.mxu0 0.0
    %1161 = vmatpush1.msra.mxu0 %v368
    %1162 = vmatprep.subr.mxu0 0.0
    %1163 = vmatpush1.msra.mxu0 %v367
    %1164 = vmatprep.subr.mxu0 0.0
    %1165 = vmatpush1.msra.mxu0 %v366
    %1166 = vmatprep.subr.mxu0 0.0
    %1167 = vmatpush1.msra.mxu0 %v365
    %1168 = vmatprep.subr.mxu0 0.0
    %1169 = vmatpush2.msra.mxu0 %v396
    %1170 = vmatprep.subr.mxu0 0.0
    %1171 = vmatpush2.msra.mxu0 %v395
    %1172 = vmatprep.subr.mxu0 0.0
    %1173 = vmatpush2.msra.mxu0 %v394
    %1174 = vmatprep.subr.mxu0 0.0
    %1175 = vmatpush2.msra.mxu0 %v393
    %1176 = vmatprep.subr.mxu0 0.0
    %1177 = vmatpush2.msra.mxu0 %v392
    %1178 = vmatprep.subr.mxu0 0.0
    %1179 = vmatpush2.msra.mxu0 %v391
    %1180 = vmatprep.subr.mxu0 0.0
    %1181 = vmatpush2.msra.mxu0 %v390
    %1182 = vmatprep.subr.mxu0 0.0
    %1183 = vmatpush2.msra.mxu0 %v389
    %1184 = vmatprep.subr.mxu0 0.0
    %1185 = vmatpush2.msra.mxu0 %v388
    %1186 = vmatprep.subr.mxu0 0.0
    %1187 = vmatpush2.msra.mxu0 %v387
    %1188 = vmatprep.subr.mxu0 0.0
    %1189 = vmatpush2.msra.mxu0 %v386
    %1190 = vmatprep.subr.mxu0 0.0
    %1191 = vmatpush2.msra.mxu0 %v385
    %1192 = vmatprep.subr.mxu0 0.0
    %1193 = vmatpush2.msra.mxu0 %v384
    %1194 = vmatprep.subr.mxu0 0.0
    %1195 = vmatpush2.msra.mxu0 %v383
    %1196 = vmatprep.subr.mxu0 0.0
    %1197 = vmatpush2.msra.mxu0 %v382
    %1198 = vmatprep.subr.mxu0 0.0
    %1199 = vmatpush2.msra.mxu0 %v381
    %1200 = vmatprep.mubr.f32.mxu0 %v42
    %1201 = vmatmul.mubr.f32.gmra.mxu0 %v41
    %v1202 = vpop.f32.mrf.mxu0
    %v1203 = vadd.f32 %v1133, %v1202
    %v1204 = vpop.f32.mrf.mxu0
    %1205 = vdwg.mxu0
    %1206 = vmatprep.subr.mxu0 0.0
    %1207 = vmatpush1.msra.mxu0 %v412
    %1208 = vmatprep.subr.mxu0 0.0
    %1209 = vmatpush1.msra.mxu0 %v411
    %1210 = vmatprep.subr.mxu0 0.0
    %1211 = vmatpush1.msra.mxu0 %v410
    %1212 = vmatprep.subr.mxu0 0.0
    %1213 = vmatpush1.msra.mxu0 %v409
    %1214 = vmatprep.subr.mxu0 0.0
    %1215 = vmatpush1.msra.mxu0 %v408
    %1216 = vmatprep.subr.mxu0 0.0
    %1217 = vmatpush1.msra.mxu0 %v407
    %1218 = vmatprep.subr.mxu0 0.0
    %1219 = vmatpush1.msra.mxu0 %v406
    %1220 = vmatprep.subr.mxu0 0.0
    %1221 = vmatpush1.msra.mxu0 %v405
    %1222 = vmatprep.subr.mxu0 0.0
    %1223 = vmatpush1.msra.mxu0 %v404
    %1224 = vmatprep.subr.mxu0 0.0
    %1225 = vmatpush1.msra.mxu0 %v403
    %1226 = vmatprep.subr.mxu0 0.0
    %1227 = vmatpush1.msra.mxu0 %v402
    %1228 = vmatprep.subr.mxu0 0.0
    %1229 = vmatpush1.msra.mxu0 %v401
    %1230 = vmatprep.subr.mxu0 0.0
    %1231 = vmatpush1.msra.mxu0 %v400
    %1232 = vmatprep.subr.mxu0 0.0
    %1233 = vmatpush1.msra.mxu0 %v399
    %1234 = vmatprep.subr.mxu0 0.0
    %1235 = vmatpush1.msra.mxu0 %v398
    %1236 = vmatprep.subr.mxu0 0.0
    %1237 = vmatpush1.msra.mxu0 %v397
    %1238 = vmatprep.subr.mxu0 0.0
    %1239 = vmatpush2.msra.mxu0 %v428
    %1240 = vmatprep.subr.mxu0 0.0
    %1241 = vmatpush2.msra.mxu0 %v427
    %1242 = vmatprep.subr.mxu0 0.0
    %1243 = vmatpush2.msra.mxu0 %v426
    %1244 = vmatprep.subr.mxu0 0.0
    %1245 = vmatpush2.msra.mxu0 %v425
    %1246 = vmatprep.subr.mxu0 0.0
    %1247 = vmatpush2.msra.mxu0 %v424
    %1248 = vmatprep.subr.mxu0 0.0
    %1249 = vmatpush2.msra.mxu0 %v423
    %1250 = vmatprep.subr.mxu0 0.0
    %1251 = vmatpush2.msra.mxu0 %v422
    %1252 = vmatprep.subr.mxu0 0.0
    %1253 = vmatpush2.msra.mxu0 %v421
    %1254 = vmatprep.subr.mxu0 0.0
    %1255 = vmatpush2.msra.mxu0 %v420
    %1256 = vmatprep.subr.mxu0 0.0
    %1257 = vmatpush2.msra.mxu0 %v419
    %1258 = vmatprep.subr.mxu0 0.0
    %1259 = vmatpush2.msra.mxu0 %v418
    %1260 = vmatprep.subr.mxu0 0.0
    %1261 = vmatpush2.msra.mxu0 %v417
    %1262 = vmatprep.subr.mxu0 0.0
    %1263 = vmatpush2.msra.mxu0 %v416
    %1264 = vmatprep.subr.mxu0 0.0
    %1265 = vmatpush2.msra.mxu0 %v415
    %1266 = vmatprep.subr.mxu0 0.0
    %1267 = vmatpush2.msra.mxu0 %v414
    %1268 = vmatprep.subr.mxu0 0.0
    %1269 = vmatpush2.msra.mxu0 %v413
    %1270 = vmatprep.mubr.f32.mxu0 %v44
    %1271 = vmatmul.mubr.f32.gmra.mxu0 %v43
    %v1272 = vpop.f32.mrf.mxu0
    %v1273 = vadd.f32 %v1203, %v1272
    %v1274 = vpop.f32.mrf.mxu0
    %1275 = vdwg.mxu0
    %v1276 = vld [vmem:[%s3] sm:$0xff]
    %v1277 = vld [vmem:[%s3 + $0x8] sm:$0xff]
    %v1278 = vld [vmem:[%s3 + $0x10] sm:$0xff]
    %v1279 = vld [vmem:[%s3 + $0x18] sm:$0xff]
    %v1280 = vld [vmem:[%s3 + $0x20] sm:$0xff]
    %v1281 = vld [vmem:[%s3 + $0x28] sm:$0xff]
    %v1282 = vld [vmem:[%s3 + $0x30] sm:$0xff]
    %v1283 = vld [vmem:[%s3 + $0x38] sm:$0xff]
    %v1284 = vld [vmem:[%s3 + $0x40] sm:$0xff]
    %v1285 = vld [vmem:[%s3 + $0x48] sm:$0xff]
    %v1286 = vld [vmem:[%s3 + $0x50] sm:$0xff]
    %v1287 = vld [vmem:[%s3 + $0x58] sm:$0xff]
    %v1288 = vld [vmem:[%s3 + $0x60] sm:$0xff]
    %v1289 = vld [vmem:[%s3 + $0x68] sm:$0xff]
    %v1290 = vld [vmem:[%s3 + $0x70] sm:$0xff]
    %v1291 = vld [vmem:[%s3 + $0x78] sm:$0xff]
    %v1292 = vld [vmem:[%s3 + $0x80] sm:$0xff]
    %v1293 = vld [vmem:[%s3 + $0x88] sm:$0xff]
    %v1294 = vld [vmem:[%s3 + $0x90] sm:$0xff]
    %v1295 = vld [vmem:[%s3 + $0x98] sm:$0xff]
    %v1296 = vld [vmem:[%s3 + $0xa0] sm:$0xff]
    %v1297 = vld [vmem:[%s3 + $0xa8] sm:$0xff]
    %v1298 = vld [vmem:[%s3 + $0xb0] sm:$0xff]
    %v1299 = vld [vmem:[%s3 + $0xb8] sm:$0xff]
    %v1300 = vld [vmem:[%s3 + $0xc0] sm:$0xff]
    %v1301 = vld [vmem:[%s3 + $0xc8] sm:$0xff]
    %v1302 = vld [vmem:[%s3 + $0xd0] sm:$0xff]
    %v1303 = vld [vmem:[%s3 + $0xd8] sm:$0xff]
    %v1304 = vld [vmem:[%s3 + $0xe0] sm:$0xff]
    %v1305 = vld [vmem:[%s3 + $0xe8] sm:$0xff]
    %v1306 = vld [vmem:[%s3 + $0xf0] sm:$0xff]
    %v1307 = vld [vmem:[%s3 + $0xf8] sm:$0xff]
    %v1308 = vld [vmem:[%s3 + $0x100] sm:$0xff]
    %v1309 = vld [vmem:[%s3 + $0x108] sm:$0xff]
    %v1310 = vld [vmem:[%s3 + $0x110] sm:$0xff]
    %v1311 = vld [vmem:[%s3 + $0x118] sm:$0xff]
    %v1312 = vld [vmem:[%s3 + $0x120] sm:$0xff]
    %v1313 = vld [vmem:[%s3 + $0x128] sm:$0xff]
    %v1314 = vld [vmem:[%s3 + $0x130] sm:$0xff]
    %v1315 = vld [vmem:[%s3 + $0x138] sm:$0xff]
    %v1316 = vld [vmem:[%s3 + $0x140] sm:$0xff]
    %v1317 = vld [vmem:[%s3 + $0x148] sm:$0xff]
    %v1318 = vld [vmem:[%s3 + $0x150] sm:$0xff]
    %v1319 = vld [vmem:[%s3 + $0x158] sm:$0xff]
    %v1320 = vld [vmem:[%s3 + $0x160] sm:$0xff]
    %v1321 = vld [vmem:[%s3 + $0x168] sm:$0xff]
    %v1322 = vld [vmem:[%s3 + $0x170] sm:$0xff]
    %v1323 = vld [vmem:[%s3 + $0x178] sm:$0xff]
    %v1324 = vld [vmem:[%s3 + $0x180] sm:$0xff]
    %v1325 = vld [vmem:[%s3 + $0x188] sm:$0xff]
    %v1326 = vld [vmem:[%s3 + $0x190] sm:$0xff]
    %v1327 = vld [vmem:[%s3 + $0x198] sm:$0xff]
    %v1328 = vld [vmem:[%s3 + $0x1a0] sm:$0xff]
    %v1329 = vld [vmem:[%s3 + $0x1a8] sm:$0xff]
    %v1330 = vld [vmem:[%s3 + $0x1b0] sm:$0xff]
    %v1331 = vld [vmem:[%s3 + $0x1b8] sm:$0xff]
    %v1332 = vld [vmem:[%s3 + $0x1c0] sm:$0xff]
    %v1333 = vld [vmem:[%s3 + $0x1c8] sm:$0xff]
    %v1334 = vld [vmem:[%s3 + $0x1d0] sm:$0xff]
    %v1335 = vld [vmem:[%s3 + $0x1d8] sm:$0xff]
    %v1336 = vld [vmem:[%s3 + $0x1e0] sm:$0xff]
    %v1337 = vld [vmem:[%s3 + $0x1e8] sm:$0xff]
    %v1338 = vld [vmem:[%s3 + $0x1f0] sm:$0xff]
    %v1339 = vld [vmem:[%s3 + $0x1f8] sm:$0xff]
    %v1340 = vld [vmem:[%s4] sm:$0xf]
    %v1342 = vlaneseq
    %v1343 = vshrl.u32 %v1342, 7
    %v1344 = vsub.s32 0, %v1343
    %v1345 = vrot.slane %v1340, %v1344
    %v1346 = vlaneseq
    %v1347 = vshrl.u32 %v1346, 7
    %v1348 = vsub.s32 1, %v1347
    %v1349 = vrot.slane %v1340, %v1348
    %v1350 = vlaneseq
    %v1351 = vshrl.u32 %v1350, 7
    %v1352 = vsub.s32 2, %v1351
    %v1353 = vrot.slane %v1340, %v1352
    %v1354 = vlaneseq
    %v1355 = vshrl.u32 %v1354, 7
    %v1356 = vsub.s32 3, %v1355
    %v1357 = vrot.slane %v1340, %v1356
    %1362 = vmatprep.subr.mxu0 %v1337
    %1363 = vmatpush1.msra.mxu0 %v1336
    %1364 = vmatprep.subr.mxu0 %v1333
    %1365 = vmatpush1.msra.mxu0 %v1332
    %1366 = vmatprep.subr.mxu0 %v1329
    %1367 = vmatpush1.msra.mxu0 %v1328
    %1368 = vmatprep.subr.mxu0 %v1325
    %1369 = vmatpush1.msra.mxu0 %v1324
    %1370 = vmatprep.subr.mxu0 %v1321
    %1371 = vmatpush1.msra.mxu0 %v1320
    %1372 = vmatprep.subr.mxu0 %v1317
    %1373 = vmatpush1.msra.mxu0 %v1316
    %1374 = vmatprep.subr.mxu0 %v1313
    %1375 = vmatpush1.msra.mxu0 %v1312
    %1376 = vmatprep.subr.mxu0 %v1309
    %1377 = vmatpush1.msra.mxu0 %v1308
    %1378 = vmatprep.subr.mxu0 %v1305
    %1379 = vmatpush1.msra.mxu0 %v1304
    %1380 = vmatprep.subr.mxu0 %v1301
    %1381 = vmatpush1.msra.mxu0 %v1300
    %1382 = vmatprep.subr.mxu0 %v1297
    %1383 = vmatpush1.msra.mxu0 %v1296
    %1384 = vmatprep.subr.mxu0 %v1293
    %1385 = vmatpush1.msra.mxu0 %v1292
    %1386 = vmatprep.subr.mxu0 %v1289
    %1387 = vmatpush1.msra.mxu0 %v1288
    %1388 = vmatprep.subr.mxu0 %v1285
    %1389 = vmatpush1.msra.mxu0 %v1284
    %1390 = vmatprep.subr.mxu0 %v1281
    %1391 = vmatpush1.msra.mxu0 %v1280
    %1392 = vmatprep.subr.mxu0 %v1277
    %1393 = vmatpush1.msra.mxu0 %v1276
    %1394 = vmatprep.subr.mxu0 0.0
    %1395 = vmatpush2.msra.mxu0 0.0
    %1396 = vmatprep.subr.mxu0 0.0
    %1397 = vmatpush2.msra.mxu0 0.0
    %1398 = vmatprep.subr.mxu0 0.0
    %1399 = vmatpush2.msra.mxu0 0.0
    %1400 = vmatprep.subr.mxu0 0.0
    %1401 = vmatpush2.msra.mxu0 0.0
    %1402 = vmatprep.subr.mxu0 0.0
    %1403 = vmatpush2.msra.mxu0 0.0
    %1404 = vmatprep.subr.mxu0 0.0
    %1405 = vmatpush2.msra.mxu0 0.0
    %1406 = vmatprep.subr.mxu0 0.0
    %1407 = vmatpush2.msra.mxu0 0.0
    %1408 = vmatprep.subr.mxu0 0.0
    %1409 = vmatpush2.msra.mxu0 0.0
    %1410 = vmatprep.subr.mxu0 0.0
    %1411 = vmatpush2.msra.mxu0 0.0
    %1412 = vmatprep.subr.mxu0 0.0
    %1413 = vmatpush2.msra.mxu0 0.0
    %1414 = vmatprep.subr.mxu0 0.0
    %1415 = vmatpush2.msra.mxu0 0.0
    %1416 = vmatprep.subr.mxu0 0.0
    %1417 = vmatpush2.msra.mxu0 0.0
    %1418 = vmatprep.subr.mxu0 0.0
    %1419 = vmatpush2.msra.mxu0 0.0
    %1420 = vmatprep.subr.mxu0 0.0
    %1421 = vmatpush2.msra.mxu0 0.0
    %1422 = vmatprep.subr.mxu0 0.0
    %1423 = vmatpush2.msra.mxu0 0.0
    %1424 = vmatprep.subr.mxu0 0.0
    %1425 = vmatpush2.msra.mxu0 0.0
    %1426 = vmatprep.mubr.f32.mxu0 0.0
    %1427 = vmatmul.mubr.f32.gmra.mxu0 %v1273
    %v1428 = vpop.f32.mrf.mxu0
    %v1429 = vadd.f32 %v1345, %v1428
    %v1430 = vpop.f32.mrf.mxu0
    %v1431 = vadd.f32 %v1349, %v1430
    %1432 = vdwg.mxu0
    %1433 = vmatprep.subr.mxu0 %v1339
    %1434 = vmatpush1.msra.mxu0 %v1338
    %1435 = vmatprep.subr.mxu0 %v1335
    %1436 = vmatpush1.msra.mxu0 %v1334
    %1437 = vmatprep.subr.mxu0 %v1331
    %1438 = vmatpush1.msra.mxu0 %v1330
    %1439 = vmatprep.subr.mxu0 %v1327
    %1440 = vmatpush1.msra.mxu0 %v1326
    %1441 = vmatprep.subr.mxu0 %v1323
    %1442 = vmatpush1.msra.mxu0 %v1322
    %1443 = vmatprep.subr.mxu0 %v1319
    %1444 = vmatpush1.msra.mxu0 %v1318
    %1445 = vmatprep.subr.mxu0 %v1315
    %1446 = vmatpush1.msra.mxu0 %v1314
    %1447 = vmatprep.subr.mxu0 %v1311
    %1448 = vmatpush1.msra.mxu0 %v1310
    %1449 = vmatprep.subr.mxu0 %v1307
    %1450 = vmatpush1.msra.mxu0 %v1306
    %1451 = vmatprep.subr.mxu0 %v1303
    %1452 = vmatpush1.msra.mxu0 %v1302
    %1453 = vmatprep.subr.mxu0 %v1299
    %1454 = vmatpush1.msra.mxu0 %v1298
    %1455 = vmatprep.subr.mxu0 %v1295
    %1456 = vmatpush1.msra.mxu0 %v1294
    %1457 = vmatprep.subr.mxu0 %v1291
    %1458 = vmatpush1.msra.mxu0 %v1290
    %1459 = vmatprep.subr.mxu0 %v1287
    %1460 = vmatpush1.msra.mxu0 %v1286
    %1461 = vmatprep.subr.mxu0 %v1283
    %1462 = vmatpush1.msra.mxu0 %v1282
    %1463 = vmatprep.subr.mxu0 %v1279
    %1464 = vmatpush1.msra.mxu0 %v1278
    %1465 = vmatprep.subr.mxu0 0.0
    %1466 = vmatpush2.msra.mxu0 0.0
    %1467 = vmatprep.subr.mxu0 0.0
    %1468 = vmatpush2.msra.mxu0 0.0
    %1469 = vmatprep.subr.mxu0 0.0
    %1470 = vmatpush2.msra.mxu0 0.0
    %1471 = vmatprep.subr.mxu0 0.0
    %1472 = vmatpush2.msra.mxu0 0.0
    %1473 = vmatprep.subr.mxu0 0.0
    %1474 = vmatpush2.msra.mxu0 0.0
    %1475 = vmatprep.subr.mxu0 0.0
    %1476 = vmatpush2.msra.mxu0 0.0
    %1477 = vmatprep.subr.mxu0 0.0
    %1478 = vmatpush2.msra.mxu0 0.0
    %1479 = vmatprep.subr.mxu0 0.0
    %1480 = vmatpush2.msra.mxu0 0.0
    %1481 = vmatprep.subr.mxu0 0.0
    %1482 = vmatpush2.msra.mxu0 0.0
    %1483 = vmatprep.subr.mxu0 0.0
    %1484 = vmatpush2.msra.mxu0 0.0
    %1485 = vmatprep.subr.mxu0 0.0
    %1486 = vmatpush2.msra.mxu0 0.0
    %1487 = vmatprep.subr.mxu0 0.0
    %1488 = vmatpush2.msra.mxu0 0.0
    %1489 = vmatprep.subr.mxu0 0.0
    %1490 = vmatpush2.msra.mxu0 0.0
    %1491 = vmatprep.subr.mxu0 0.0
    %1492 = vmatpush2.msra.mxu0 0.0
    %1493 = vmatprep.subr.mxu0 0.0
    %1494 = vmatpush2.msra.mxu0 0.0
    %1495 = vmatprep.subr.mxu0 0.0
    %1496 = vmatpush2.msra.mxu0 0.0
    %1497 = vmatprep.mubr.f32.mxu0 0.0
    %1498 = vmatmul.mubr.f32.gmra.mxu0 %v1273
    %v1499 = vpop.f32.mrf.mxu0
    %v1500 = vadd.f32 %v1353, %v1499
    %v1501 = vpop.f32.mrf.mxu0
    %v1502 = vadd.f32 %v1357, %v1501
    %1503 = vdwg.mxu0
    %1504 = vst [vmem:[#allocation2] sm:$0xff] %v1429
    %1505 = vst [vmem:[#allocation2 + $0x8] sm:$0xff] %v1431
    %1506 = vst [vmem:[#allocation2 + $0x10] sm:$0xff] %v1500
    %1507 = vst [vmem:[#allocation2 + $0x18] sm:$0xff] %v1502
    // Predicated region
    $region22: #{encoder_forward.1} parent=1 // pred_check
      _
    $region23: #{encoder_forward.1} parent=1 // pred_check_branch
      %1509 = sbr.rel (0) target = $region25
    $region24: #{encoder_forward.1} parent=1 // pred_region
      %s1511 = ssub.s32 512, 512
      %1512 = vsyncadd [#allocation3], %s1511
      %s1514 = sshll.u32 [#allocation2], 4
      %s1515 = int_to_ptr.vmem [resolvable:$true] %s1514
      %1517 = dma.vmem_to_hbm [thread:$0]  %s1515, 512, %s5, [#allocation3]
    $region25: #{encoder_forward.1} parent=1 // pred_fallthru
      _
    // Predicated region
    $region26: #{encoder_forward.1} parent=1 // pred_check
      _
    $region27: #{encoder_forward.1} parent=1 // pred_check_branch
      %1519 = sbr.rel (0) target = $region29
    $region28: #{encoder_forward.1} parent=1 // pred_region
      %1520 = dma.done [#allocation3], 512
    $region29: #{encoder_forward.1} parent=1 // pred_fallthru
      _
    %1521 = vsyncpa [#allocation3], 1

</llo_original>
